<compile_context>
chip_gen: v6e
topology: v6e:2x2x1
jax: 0.10.0
libtpu: 0.0.40
codegen_flags: <defaults>
</compile_context>

<pallas_src>
import functools

import jax
import jax.numpy as jnp
from jax.experimental import pallas as pl
from jax.experimental.pallas import tpu as pltpu


def _block_kernel(x_ref,
                  ln1g_ref, ln1b_ref,
                  wattn_ref, battn_ref,
                  wcproj_ref, bcproj_ref,
                  ln2g_ref, ln2b_ref,
                  wfc_ref, bfc_ref,
                  wmproj_ref, bmproj_ref,
                  out_ref,
                  *, n_head, eps, mlp_chunk):
    x = x_ref[...]                                 # (S, D) f32 (batch dim squeezed)
    S, D = x.shape
    hd = D // n_head

    def layer_norm(h, g, b):
        mu = jnp.mean(h, axis=-1, keepdims=True)
        var = jnp.mean((h - mu) ** 2, axis=-1, keepdims=True)   # biased var (torch LN)
        return (h - mu) * jax.lax.rsqrt(var + eps) * g + b

    def bf16(t):
        return t.astype(jnp.bfloat16)

    # ---- ln_1 + causal self-attention (all heads in one batched matmul) ----
    h1 = layer_norm(x, ln1g_ref[...], ln1b_ref[...])
    qkv = jnp.dot(bf16(h1), wattn_ref[...],
                  preferred_element_type=jnp.float32) + battn_ref[...]   # (S, 3D) f32
    # 1/sqrt(hd) scale (when enabled) was folded into w_attn/b_attn query columns
    # at prepare_params time -> no per-call (S, D) VPU multiply here.
    qh = bf16(qkv[:, :D]).reshape(S, n_head, hd).transpose(1, 0, 2)      # (H, S, hd)
    kh = bf16(qkv[:, D:2 * D]).reshape(S, n_head, hd).transpose(1, 0, 2)
    vh = bf16(qkv[:, 2 * D:]).reshape(S, n_head, hd).transpose(1, 0, 2)

    # batched QK^T over heads (contract hd, batch over H) -- no explicit K transpose
    w = jax.lax.dot_general(qh, kh, (((2,), (2,)), ((0,), (0,))),
                            preferred_element_type=jnp.float32)          # (H, S, S) f32
    row = jax.lax.broadcasted_iota(jnp.int32, (S, S), 0)
    col = jax.lax.broadcasted_iota(jnp.int32, (S, S), 1)
    w = jnp.where((row >= col)[None], w, jnp.float32(-10000.0))          # masked_bias
    w = w - jnp.max(w, axis=-1, keepdims=True)                           # stable softmax
    e = jnp.exp(w)
    p = e * pl.reciprocal(jnp.sum(e, axis=-1, keepdims=True), approx=True)

    av = jax.lax.dot_general(bf16(p), vh, (((2,), (1,)), ((0,), (0,))),
                             preferred_element_type=jnp.float32)         # (H, S, hd)
    a = av.transpose(1, 0, 2).reshape(S, D)                              # merge heads once
    a = jnp.dot(bf16(a), wcproj_ref[...],
                preferred_element_type=jnp.float32) + bcproj_ref[...]

    hidden = x + a                                 # residual 1

    # ---- ln_2 + MLP (gelu_new), inner dim processed in static chunks ----
    h2 = bf16(layer_norm(hidden, ln2g_ref[...], ln2b_ref[...]))
    c = 0.7978845608028654                         # sqrt(2/pi)
    inner = wfc_ref.shape[1]
    acc = jnp.zeros((S, D), jnp.float32)
    for s0 in range(0, inner, mlp_chunk):          # static ref slices (zero-cost views)
        ffc = jnp.dot(h2, wfc_ref[:, s0:s0 + mlp_chunk],
                      preferred_element_type=jnp.float32) + bfc_ref[:, s0:s0 + mlp_chunk]
        ffc = 0.5 * ffc * (1.0 + jnp.tanh(c * (ffc + 0.044715 * ffc * ffc * ffc)))
        acc = acc + jnp.dot(bf16(ffc), wmproj_ref[s0:s0 + mlp_chunk, :],
                            preferred_element_type=jnp.float32)

    out_ref[...] = hidden + acc + bmproj_ref[...]  # residual 2


def _pick_mlp_chunk(inner):
    if inner <= 1024:
        return inner
    for cand in (1024, 768, 512, 256, 128):
        if inner % cand == 0:
            return cand
    return inner


def prepare_params(params, *, n_head, scale=False):
    """One-time (model-load) weight transform: bf16 matmul weights, scale folding.

    Biases and LayerNorm params stay f32 (applied on the VPU in f32)."""
    D = params["w_attn"].shape[0]
    hd = D // n_head
    w_attn = params["w_attn"]
    b_attn = params["b_attn"]
    if scale:
        s = jnp.concatenate([jnp.full((D,), 1.0 / float(hd) ** 0.5, jnp.float32),
                             jnp.ones((2 * D,), jnp.float32)])
        w_attn = w_attn * s[None, :]
        b_attn = b_attn * s[None, :]
    prepped = dict(params)
    prepped["w_attn"] = w_attn.astype(jnp.bfloat16)
    prepped["b_attn"] = b_attn
    prepped["w_cproj"] = params["w_cproj"].astype(jnp.bfloat16)
    prepped["w_fc"] = params["w_fc"].astype(jnp.bfloat16)
    prepped["w_mproj"] = params["w_mproj"].astype(jnp.bfloat16)
    return prepped


@functools.partial(jax.jit, static_argnames=("n_head", "eps"))
def gpt2_block(x, params, *, n_head, eps=1e-5):
    """x: (B, S, D) f32. params: output of prepare_params (bf16 weights, f32 LN/bias)."""
    B, S, D = x.shape
    inner = params["w_fc"].shape[1]
    mlp_chunk = _pick_mlp_chunk(inner)

    kernel = functools.partial(_block_kernel, n_head=n_head, eps=eps,
                               mlp_chunk=mlp_chunk)

    # VMEM budget from the actual per-step footprint (+ headroom), capped per chip gen.
    weight_bytes = (D * 3 * D + D * D + D * inner + inner * D) * 2          # bf16 weights
    const_f32_bytes = (3 * D + D + inner + D + 4 * D) * 4                   # biases + LN
    act = S * D * 4
    est = (2 * (weight_bytes + const_f32_bytes)      # constants, double-buffered
           + 4 * act                                 # x / out, double-buffered
           + S * 3 * D * (4 + 2)                     # qkv f32 + bf16 q/k/v head copies
           + 3 * n_head * S * S * 4                  # scores / exp / probs (f32)
           + 4 * act                                 # av, merged a, hidden, h2
           + 2 * S * mlp_chunk * 4                   # MLP chunk + gelu intermediate
           + (8 << 20))                              # Mosaic internal scratch + headroom
    try:
        # trace-time hardware info probe only -- kernel errors are never caught here
        vmem_cap = pltpu.get_tpu_info().vmem_capacity_bytes
    except Exception:
        vmem_cap = 128 << 20
    vmem_limit = max(32 << 20, min(est, int(vmem_cap * 0.85)))

    def const_spec(shape):
        return pl.BlockSpec(shape, lambda b: (0,) * len(shape))

    in_specs = [
        pl.BlockSpec((None, S, D), lambda b: (b, 0, 0)),   # hidden_states (b squeezed)
        const_spec((1, D)), const_spec((1, D)),            # ln_1 gamma/beta
        const_spec((D, 3 * D)), const_spec((1, 3 * D)),    # c_attn W/b
        const_spec((D, D)), const_spec((1, D)),            # attn c_proj W/b
        const_spec((1, D)), const_spec((1, D)),            # ln_2 gamma/beta
        const_spec((D, inner)), const_spec((1, inner)),    # mlp c_fc W/b
        const_spec((inner, D)), const_spec((1, D)),        # mlp c_proj W/b
    ]

    return pl.pallas_call(
        kernel,
        out_shape=jax.ShapeDtypeStruct((B, S, D), jnp.float32),
        grid=(B,),
        in_specs=in_specs,
        out_specs=pl.BlockSpec((None, S, D), lambda b: (b, 0, 0)),
        compiler_params=pltpu.CompilerParams(
            dimension_semantics=("parallel",),
            vmem_limit_bytes=vmem_limit),
    )(x,
      params["ln1_g"], params["ln1_b"],
      params["w_attn"], params["b_attn"],
      params["w_cproj"], params["b_cproj"],
      params["ln2_g"], params["ln2_b"],
      params["w_fc"], params["b_fc"],
      params["w_mproj"], params["b_mproj"])


# -------- pure-JAX f32 reference (for correctness check) --------
def gpt2_block_ref(x, p, *, n_head, scale=False, eps=1e-5):
    B, S, D = x.shape
    hd = D // n_head

    def ln(h, g, b):
        mu = h.mean(-1, keepdims=True)
        var = ((h - mu) ** 2).mean(-1, keepdims=True)
        return (h - mu) / jnp.sqrt(var + eps) * g[0] + b[0]

    h1 = ln(x, p["ln1_g"], p["ln1_b"])
    qkv = h1 @ p["w_attn"] + p["b_attn"][0]
    q, k, v = jnp.split(qkv, 3, axis=-1)
    q = q.reshape(B, S, n_head, hd).transpose(0, 2, 1, 3)
    k = k.reshape(B, S, n_head, hd).transpose(0, 2, 1, 3)
    v = v.reshape(B, S, n_head, hd).transpose(0, 2, 1, 3)
    w = jnp.einsum("bhqd,bhkd->bhqk", q, k)
    if scale:
        w = w / (float(hd) ** 0.5)
    mask = jnp.tril(jnp.ones((S, S), bool))
    w = jnp.where(mask, w, jnp.float32(-10000.0))
    w = jax.nn.softmax(w, axis=-1)
    a = jnp.einsum("bhqk,bhkd->bhqd", w, v).transpose(0, 2, 1, 3).reshape(B, S, D)
    a = a @ p["w_cproj"] + p["b_cproj"][0]
    hidden = x + a
    h2 = ln(hidden, p["ln2_g"], p["ln2_b"])
    ff = h2 @ p["w_fc"] + p["b_fc"][0]
    c = 0.7978845608028654
    ff = 0.5 * ff * (1.0 + jnp.tanh(c * (ff + 0.044715 * ff ** 3)))
    ff = ff @ p["w_mproj"] + p["b_mproj"][0]
    return hidden + ff


if __name__ == "__main__":
    # small but lane-dense shapes: batch=2, seq=8, n_embd=128, n_head=4
    B, S, D, H = 2, 8, 128, 4
    INNER = 4 * D                     # config.n_inner = None -> 4 * n_embd

    key = jax.random.PRNGKey(0)
    ks = jax.random.split(key, 9)
    std = 0.02
    params = {
        "ln1_g": jnp.ones((1, D), jnp.float32),
        "ln1_b": jnp.zeros((1, D), jnp.float32),
        "w_attn": std * jax.random.normal(ks[0], (D, 3 * D), jnp.float32),
        "b_attn": std * jax.random.normal(ks[1], (1, 3 * D), jnp.float32),
        "w_cproj": std * jax.random.normal(ks[2], (D, D), jnp.float32),
        "b_cproj": std * jax.random.normal(ks[3], (1, D), jnp.float32),
        "ln2_g": jnp.ones((1, D), jnp.float32),
        "ln2_b": jnp.zeros((1, D), jnp.float32),
        "w_fc": std * jax.random.normal(ks[4], (D, INNER), jnp.float32),
        "b_fc": std * jax.random.normal(ks[5], (1, INNER), jnp.float32),
        "w_mproj": std * jax.random.normal(ks[6], (INNER, D), jnp.float32),
        "b_mproj": std * jax.random.normal(ks[7], (1, D), jnp.float32),
    }
    x = jax.random.normal(ks[8], (B, S, D), jnp.float32)

    # Block default (scale=False) plus the HF-production scale=True path.
    for sc in (False, True):
        prepped = prepare_params(params, n_head=H, scale=sc)      # one-time weight prep
        out = jax.block_until_ready(gpt2_block(x, prepped, n_head=H))
        ref = gpt2_block_ref(x, params, n_head=H, scale=sc)
        assert out.shape == (B, S, D)
        # bf16 matmul operands (f32 accumulation) + approx reciprocal -> loosened tol
        assert jnp.allclose(out, ref, atol=3e-2, rtol=3e-2), \
            f"mismatch vs JAX reference (scale={sc})"

    print("KERNEL_OK")
</pallas_src>

<mosaic_0001>
module attributes {stable_mosaic.version = 11 : i64} {
  func.func @_block_kernel(%arg0: i32, %arg1: memref<1x8x128xf32, #tpu.memory_space<vmem>>, %arg2: memref<1x128xf32, #tpu.memory_space<vmem>>, %arg3: memref<1x128xf32, #tpu.memory_space<vmem>>, %arg4: memref<128x384xbf16, #tpu.memory_space<vmem>>, %arg5: memref<1x384xf32, #tpu.memory_space<vmem>>, %arg6: memref<128x128xbf16, #tpu.memory_space<vmem>>, %arg7: memref<1x128xf32, #tpu.memory_space<vmem>>, %arg8: memref<1x128xf32, #tpu.memory_space<vmem>>, %arg9: memref<1x128xf32, #tpu.memory_space<vmem>>, %arg10: memref<128x512xbf16, #tpu.memory_space<vmem>>, %arg11: memref<1x512xf32, #tpu.memory_space<vmem>>, %arg12: memref<512x128xbf16, #tpu.memory_space<vmem>>, %arg13: memref<1x128xf32, #tpu.memory_space<vmem>>, %arg14: memref<1x8x128xf32, #tpu.memory_space<vmem>>) attributes {dimension_semantics = [#tpu.dimension_semantics<parallel>], iteration_bounds = array<i64: 2>, scalar_prefetch = 0 : i64, scratch_operands = 0 : i64, tpu.core_type = #tpu.core_type<tc>, window_params = [{transform_indices = @transform_0, window_bounds = array<i64: 1, 8, 128>}, {pipeline_mode = #tpu.pipeline_mode<synchronous>, transform_indices = @transform_1, window_bounds = array<i64: 1, 128>}, {pipeline_mode = #tpu.pipeline_mode<synchronous>, transform_indices = @transform_2, window_bounds = array<i64: 1, 128>}, {pipeline_mode = #tpu.pipeline_mode<synchronous>, transform_indices = @transform_3, window_bounds = array<i64: 128, 384>}, {pipeline_mode = #tpu.pipeline_mode<synchronous>, transform_indices = @transform_4, window_bounds = array<i64: 1, 384>}, {pipeline_mode = #tpu.pipeline_mode<synchronous>, transform_indices = @transform_5, window_bounds = array<i64: 128, 128>}, {pipeline_mode = #tpu.pipeline_mode<synchronous>, transform_indices = @transform_6, window_bounds = array<i64: 1, 128>}, {pipeline_mode = #tpu.pipeline_mode<synchronous>, transform_indices = @transform_7, window_bounds = array<i64: 1, 128>}, {pipeline_mode = #tpu.pipeline_mode<synchronous>, transform_indices = @transform_8, window_bounds = array<i64: 1, 128>}, {pipeline_mode = #tpu.pipeline_mode<synchronous>, transform_indices = @transform_9, window_bounds = array<i64: 128, 512>}, {pipeline_mode = #tpu.pipeline_mode<synchronous>, transform_indices = @transform_10, window_bounds = array<i64: 1, 512>}, {pipeline_mode = #tpu.pipeline_mode<synchronous>, transform_indices = @transform_11, window_bounds = array<i64: 512, 128>}, {pipeline_mode = #tpu.pipeline_mode<synchronous>, transform_indices = @transform_12, window_bounds = array<i64: 1, 128>}, {transform_indices = @transform_13, window_bounds = array<i64: 1, 8, 128>}]} {
    %c0 = arith.constant 0 : index
    %c0_0 = arith.constant 0 : index
    %c0_1 = arith.constant 0 : index
    %0 = vector.load %arg1[%c0, %c0_0, %c0_1] : memref<1x8x128xf32, #tpu.memory_space<vmem>>, vector<1x8x128xf32>
    %1 = vector.shape_cast %0 : vector<1x8x128xf32> to vector<8x128xf32>
    %c0_2 = arith.constant 0 : index
    %c0_3 = arith.constant 0 : index
    %2 = vector.load %arg2[%c0_2, %c0_3] : memref<1x128xf32, #tpu.memory_space<vmem>>, vector<1x128xf32>
    %c0_4 = arith.constant 0 : index
    %c0_5 = arith.constant 0 : index
    %3 = vector.load %arg3[%c0_4, %c0_5] : memref<1x128xf32, #tpu.memory_space<vmem>>, vector<1x128xf32>
    %cst = arith.constant dense<0.000000e+00> : vector<8xf32>
    %4 = vector.multi_reduction <add>, %1, %cst [1] : vector<8x128xf32> to vector<8xf32>
    %5 = vector.shape_cast %4 : vector<8xf32> to vector<8x1xf32>
    %cst_6 = arith.constant 1.280000e+02 : f32
    %6 = vector.broadcast %cst_6 : f32 to vector<8x1xf32>
    %7 = arith.divf %5, %6 : vector<8x1xf32>
    %8 = vector.broadcast %7 : vector<8x1xf32> to vector<8x128xf32>
    %9 = arith.subf %1, %8 : vector<8x128xf32>
    %10 = arith.mulf %9, %9 : vector<8x128xf32>
    %cst_7 = arith.constant dense<0.000000e+00> : vector<8xf32>
    %11 = vector.multi_reduction <add>, %10, %cst_7 [1] : vector<8x128xf32> to vector<8xf32>
    %12 = vector.shape_cast %11 : vector<8xf32> to vector<8x1xf32>
    %cst_8 = arith.constant 1.280000e+02 : f32
    %13 = vector.broadcast %cst_8 : f32 to vector<8x1xf32>
    %14 = arith.divf %12, %13 : vector<8x1xf32>
    %15 = vector.broadcast %7 : vector<8x1xf32> to vector<8x128xf32>
    %16 = arith.subf %1, %15 : vector<8x128xf32>
    %cst_9 = arith.constant 9.99999974E-6 : f32
    %17 = vector.broadcast %cst_9 : f32 to vector<8x1xf32>
    %18 = arith.addf %14, %17 : vector<8x1xf32>
    %19 = math.rsqrt %18 : vector<8x1xf32>
    %20 = vector.broadcast %19 : vector<8x1xf32> to vector<8x128xf32>
    %21 = arith.mulf %16, %20 : vector<8x128xf32>
    %22 = vector.broadcast %2 : vector<1x128xf32> to vector<8x128xf32>
    %23 = arith.mulf %21, %22 : vector<8x128xf32>
    %24 = vector.broadcast %3 : vector<1x128xf32> to vector<8x128xf32>
    %25 = arith.addf %23, %24 : vector<8x128xf32>
    %26 = arith.truncf %25 : vector<8x128xf32> to vector<8x128xbf16>
    %c0_10 = arith.constant 0 : index
    %c0_11 = arith.constant 0 : index
    %27 = vector.load %arg4[%c0_10, %c0_11] : memref<128x384xbf16, #tpu.memory_space<vmem>>, vector<128x384xbf16>
    %cst_12 = arith.constant dense<0.000000e+00> : vector<8x384xf32>
    %28 = tpu.matmul %26, %27, %cst_12 {dimension_numbers = #tpu.dot_dimension_numbers<[1], [0], [0], [1], [0, 0, 1, 1], [], []>} : vector<8x128xbf16>, vector<128x384xbf16>, vector<8x384xf32> -> vector<8x384xf32>
    %c0_13 = arith.constant 0 : index
    %c0_14 = arith.constant 0 : index
    %29 = vector.load %arg5[%c0_13, %c0_14] : memref<1x384xf32, #tpu.memory_space<vmem>>, vector<1x384xf32>
    %30 = vector.broadcast %29 : vector<1x384xf32> to vector<8x384xf32>
    %31 = arith.addf %28, %30 : vector<8x384xf32>
    %32 = vector.extract_strided_slice %31 {offsets = [0, 0], sizes = [8, 128], strides = [1, 1]} : vector<8x384xf32> to vector<8x128xf32>
    %33 = arith.truncf %32 : vector<8x128xf32> to vector<8x128xbf16>
    %34 = vector.shape_cast %33 : vector<8x128xbf16> to vector<8x4x32xbf16>
    %35 = tpu.transpose %34, [1, 0, 2] : vector<8x4x32xbf16> -> vector<4x8x32xbf16>
    %36 = vector.extract_strided_slice %31 {offsets = [0, 128], sizes = [8, 128], strides = [1, 1]} : vector<8x384xf32> to vector<8x128xf32>
    %37 = arith.truncf %36 : vector<8x128xf32> to vector<8x128xbf16>
    %38 = vector.shape_cast %37 : vector<8x128xbf16> to vector<8x4x32xbf16>
    %39 = tpu.transpose %38, [1, 0, 2] : vector<8x4x32xbf16> -> vector<4x8x32xbf16>
    %40 = vector.extract_strided_slice %31 {offsets = [0, 256], sizes = [8, 128], strides = [1, 1]} : vector<8x384xf32> to vector<8x128xf32>
    %41 = arith.truncf %40 : vector<8x128xf32> to vector<8x128xbf16>
    %42 = vector.shape_cast %41 : vector<8x128xbf16> to vector<8x4x32xbf16>
    %43 = tpu.transpose %42, [1, 0, 2] : vector<8x4x32xbf16> -> vector<4x8x32xbf16>
    %cst_15 = arith.constant dense<0.000000e+00> : vector<4x8x8xf32>
    %44 = tpu.matmul %35, %39, %cst_15 {dimension_numbers = #tpu.dot_dimension_numbers<[2], [2], [1], [1], [0, 0, 0, 1, 1, 1], [0], [0]>} : vector<4x8x32xbf16>, vector<4x8x32xbf16>, vector<4x8x8xf32> -> vector<4x8x8xf32>
    %45 = tpu.iota {dimensions = array<i32: 0>} : vector<8x8xi32>
    %46 = tpu.iota {dimensions = array<i32: 1>} : vector<8x8xi32>
    %47 = arith.cmpi sge, %45, %46 : vector<8x8xi32>
    %48 = vector.shape_cast %47 : vector<8x8xi1> to vector<1x8x8xi1>
    %cst_16 = arith.constant -1.000000e+04 : f32
    %49 = vector.shape_cast %48 : vector<1x8x8xi1> to vector<1x8x8xi1>
    %50 = vector.broadcast %49 : vector<1x8x8xi1> to vector<4x8x8xi1>
    %51 = vector.broadcast %cst_16 : f32 to vector<4x8x8xf32>
    %52 = arith.select %50, %44, %51 : vector<4x8x8xi1>, vector<4x8x8xf32>
    %cst_17 = arith.constant dense<0xFF800000> : vector<4x8xf32>
    %53 = vector.multi_reduction <maximumf>, %52, %cst_17 [2] : vector<4x8x8xf32> to vector<4x8xf32>
    %54 = vector.shape_cast %53 : vector<4x8xf32> to vector<4x8x1xf32>
    %55 = vector.broadcast %54 : vector<4x8x1xf32> to vector<4x8x8xf32>
    %56 = arith.subf %52, %55 : vector<4x8x8xf32>
    %57 = math.exp %56 : vector<4x8x8xf32>
    %cst_18 = arith.constant dense<0.000000e+00> : vector<4x8xf32>
    %58 = vector.multi_reduction <add>, %57, %cst_18 [2] : vector<4x8x8xf32> to vector<4x8xf32>
    %59 = vector.shape_cast %58 : vector<4x8xf32> to vector<4x8x1xf32>
    %60 = tpu.reciprocal %59 {approx = true} : vector<4x8x1xf32> -> vector<4x8x1xf32>
    %61 = vector.broadcast %60 : vector<4x8x1xf32> to vector<4x8x8xf32>
    %62 = arith.mulf %57, %61 : vector<4x8x8xf32>
    %63 = arith.truncf %62 : vector<4x8x8xf32> to vector<4x8x8xbf16>
    %cst_19 = arith.constant dense<0.000000e+00> : vector<4x8x32xf32>
    %64 = tpu.matmul %63, %43, %cst_19 {dimension_numbers = #tpu.dot_dimension_numbers<[2], [1], [1], [2], [0, 0, 0, 1, 1, 2], [0], [0]>} : vector<4x8x8xbf16>, vector<4x8x32xbf16>, vector<4x8x32xf32> -> vector<4x8x32xf32>
    %65 = tpu.transpose %64, [1, 0, 2] : vector<4x8x32xf32> -> vector<8x4x32xf32>
    %66 = vector.shape_cast %65 : vector<8x4x32xf32> to vector<8x128xf32>
    %67 = arith.truncf %66 : vector<8x128xf32> to vector<8x128xbf16>
    %c0_20 = arith.constant 0 : index
    %c0_21 = arith.constant 0 : index
    %68 = vector.load %arg6[%c0_20, %c0_21] : memref<128x128xbf16, #tpu.memory_space<vmem>>, vector<128x128xbf16>
    %cst_22 = arith.constant dense<0.000000e+00> : vector<8x128xf32>
    %69 = tpu.matmul %67, %68, %cst_22 {dimension_numbers = #tpu.dot_dimension_numbers<[1], [0], [0], [1], [0, 0, 1, 1], [], []>} : vector<8x128xbf16>, vector<128x128xbf16>, vector<8x128xf32> -> vector<8x128xf32>
    %c0_23 = arith.constant 0 : index
    %c0_24 = arith.constant 0 : index
    %70 = vector.load %arg7[%c0_23, %c0_24] : memref<1x128xf32, #tpu.memory_space<vmem>>, vector<1x128xf32>
    %71 = vector.broadcast %70 : vector<1x128xf32> to vector<8x128xf32>
    %72 = arith.addf %69, %71 : vector<8x128xf32>
    %73 = arith.addf %1, %72 : vector<8x128xf32>
    %c0_25 = arith.constant 0 : index
    %c0_26 = arith.constant 0 : index
    %74 = vector.load %arg8[%c0_25, %c0_26] : memref<1x128xf32, #tpu.memory_space<vmem>>, vector<1x128xf32>
    %c0_27 = arith.constant 0 : index
    %c0_28 = arith.constant 0 : index
    %75 = vector.load %arg9[%c0_27, %c0_28] : memref<1x128xf32, #tpu.memory_space<vmem>>, vector<1x128xf32>
    %cst_29 = arith.constant dense<0.000000e+00> : vector<8xf32>
    %76 = vector.multi_reduction <add>, %73, %cst_29 [1] : vector<8x128xf32> to vector<8xf32>
    %77 = vector.shape_cast %76 : vector<8xf32> to vector<8x1xf32>
    %cst_30 = arith.constant 1.280000e+02 : f32
    %78 = vector.broadcast %cst_30 : f32 to vector<8x1xf32>
    %79 = arith.divf %77, %78 : vector<8x1xf32>
    %80 = vector.broadcast %79 : vector<8x1xf32> to vector<8x128xf32>
    %81 = arith.subf %73, %80 : vector<8x128xf32>
    %82 = arith.mulf %81, %81 : vector<8x128xf32>
    %cst_31 = arith.constant dense<0.000000e+00> : vector<8xf32>
    %83 = vector.multi_reduction <add>, %82, %cst_31 [1] : vector<8x128xf32> to vector<8xf32>
    %84 = vector.shape_cast %83 : vector<8xf32> to vector<8x1xf32>
    %cst_32 = arith.constant 1.280000e+02 : f32
    %85 = vector.broadcast %cst_32 : f32 to vector<8x1xf32>
    %86 = arith.divf %84, %85 : vector<8x1xf32>
    %87 = vector.broadcast %79 : vector<8x1xf32> to vector<8x128xf32>
    %88 = arith.subf %73, %87 : vector<8x128xf32>
    %cst_33 = arith.constant 9.99999974E-6 : f32
    %89 = vector.broadcast %cst_33 : f32 to vector<8x1xf32>
    %90 = arith.addf %86, %89 : vector<8x1xf32>
    %91 = math.rsqrt %90 : vector<8x1xf32>
    %92 = vector.broadcast %91 : vector<8x1xf32> to vector<8x128xf32>
    %93 = arith.mulf %88, %92 : vector<8x128xf32>
    %94 = vector.broadcast %74 : vector<1x128xf32> to vector<8x128xf32>
    %95 = arith.mulf %93, %94 : vector<8x128xf32>
    %96 = vector.broadcast %75 : vector<1x128xf32> to vector<8x128xf32>
    %97 = arith.addf %95, %96 : vector<8x128xf32>
    %98 = arith.truncf %97 : vector<8x128xf32> to vector<8x128xbf16>
    %cst_34 = arith.constant 0.000000e+00 : f32
    %99 = vector.broadcast %cst_34 : f32 to vector<8x128xf32>
    %c0_35 = arith.constant 0 : index
    %c0_36 = arith.constant 0 : index
    %100 = vector.load %arg10[%c0_35, %c0_36] : memref<128x512xbf16, #tpu.memory_space<vmem>>, vector<128x512xbf16>
    %cst_37 = arith.constant dense<0.000000e+00> : vector<8x512xf32>
    %101 = tpu.matmul %98, %100, %cst_37 {dimension_numbers = #tpu.dot_dimension_numbers<[1], [0], [0], [1], [0, 0, 1, 1], [], []>} : vector<8x128xbf16>, vector<128x512xbf16>, vector<8x512xf32> -> vector<8x512xf32>
    %c0_38 = arith.constant 0 : index
    %c0_39 = arith.constant 0 : index
    %102 = vector.load %arg11[%c0_38, %c0_39] : memref<1x512xf32, #tpu.memory_space<vmem>>, vector<1x512xf32>
    %103 = vector.broadcast %102 : vector<1x512xf32> to vector<8x512xf32>
    %104 = arith.addf %101, %103 : vector<8x512xf32>
    %cst_40 = arith.constant 5.000000e-01 : f32
    %105 = vector.broadcast %cst_40 : f32 to vector<8x512xf32>
    %106 = arith.mulf %105, %104 : vector<8x512xf32>
    %cst_41 = arith.constant 4.471500e-02 : f32
    %107 = vector.broadcast %cst_41 : f32 to vector<8x512xf32>
    %108 = arith.mulf %107, %104 : vector<8x512xf32>
    %109 = arith.mulf %108, %104 : vector<8x512xf32>
    %110 = arith.mulf %109, %104 : vector<8x512xf32>
    %111 = arith.addf %104, %110 : vector<8x512xf32>
    %cst_42 = arith.constant 0.797884583 : f32
    %112 = vector.broadcast %cst_42 : f32 to vector<8x512xf32>
    %113 = arith.mulf %112, %111 : vector<8x512xf32>
    %114 = math.tanh %113 : vector<8x512xf32>
    %cst_43 = arith.constant 1.000000e+00 : f32
    %115 = vector.broadcast %cst_43 : f32 to vector<8x512xf32>
    %116 = arith.addf %115, %114 : vector<8x512xf32>
    %117 = arith.mulf %106, %116 : vector<8x512xf32>
    %118 = arith.truncf %117 : vector<8x512xf32> to vector<8x512xbf16>
    %c0_44 = arith.constant 0 : index
    %c0_45 = arith.constant 0 : index
    %119 = vector.load %arg12[%c0_44, %c0_45] : memref<512x128xbf16, #tpu.memory_space<vmem>>, vector<512x128xbf16>
    %cst_46 = arith.constant dense<0.000000e+00> : vector<8x128xf32>
    %120 = tpu.matmul %118, %119, %cst_46 {dimension_numbers = #tpu.dot_dimension_numbers<[1], [0], [0], [1], [0, 0, 1, 1], [], []>} : vector<8x512xbf16>, vector<512x128xbf16>, vector<8x128xf32> -> vector<8x128xf32>
    %121 = arith.addf %99, %120 : vector<8x128xf32>
    %122 = arith.addf %73, %121 : vector<8x128xf32>
    %c0_47 = arith.constant 0 : index
    %c0_48 = arith.constant 0 : index
    %123 = vector.load %arg13[%c0_47, %c0_48] : memref<1x128xf32, #tpu.memory_space<vmem>>, vector<1x128xf32>
    %124 = vector.broadcast %123 : vector<1x128xf32> to vector<8x128xf32>
    %125 = arith.addf %122, %124 : vector<8x128xf32>
    %c0_49 = arith.constant 0 : index
    %c0_50 = arith.constant 0 : index
    %c0_51 = arith.constant 0 : index
    %126 = vector.load %arg14[%c0_49, %c0_50, %c0_51] : memref<1x8x128xf32, #tpu.memory_space<vmem>>, vector<1x8x128xf32>
    %127 = vector.shape_cast %126 : vector<1x8x128xf32> to vector<8x128xf32>
    %128 = vector.shape_cast %125 : vector<8x128xf32> to vector<1x8x128xf32>
    tpu.vector_store %arg14[%c0_49, %c0_50, %c0_51], %128 {strides = array<i32>} : memref<1x8x128xf32, #tpu.memory_space<vmem>>, vector<1x8x128xf32>,
    return
  }
  func.func @transform_0(%arg0: i32) -> (i32, i32, i32) {
    %c0_i32 = arith.constant 0 : i32
    %c0_i32_0 = arith.constant 0 : i32
    %c0_i32_1 = arith.constant 0 : i32
    return %arg0, %c0_i32, %c0_i32_0 : i32, i32, i32
  }
  func.func @transform_1(%arg0: i32) -> (i32, i32) {
    %c0_i32 = arith.constant 0 : i32
    %c0_i32_0 = arith.constant 0 : i32
    %c0_i32_1 = arith.constant 0 : i32
    return %c0_i32, %c0_i32_0 : i32, i32
  }
  func.func @transform_2(%arg0: i32) -> (i32, i32) {
    %c0_i32 = arith.constant 0 : i32
    %c0_i32_0 = arith.constant 0 : i32
    %c0_i32_1 = arith.constant 0 : i32
    return %c0_i32, %c0_i32_0 : i32, i32
  }
  func.func @transform_3(%arg0: i32) -> (i32, i32) {
    %c0_i32 = arith.constant 0 : i32
    %c0_i32_0 = arith.constant 0 : i32
    %c0_i32_1 = arith.constant 0 : i32
    return %c0_i32, %c0_i32_0 : i32, i32
  }
  func.func @transform_4(%arg0: i32) -> (i32, i32) {
    %c0_i32 = arith.constant 0 : i32
    %c0_i32_0 = arith.constant 0 : i32
    %c0_i32_1 = arith.constant 0 : i32
    return %c0_i32, %c0_i32_0 : i32, i32
  }
  func.func @transform_5(%arg0: i32) -> (i32, i32) {
    %c0_i32 = arith.constant 0 : i32
    %c0_i32_0 = arith.constant 0 : i32
    %c0_i32_1 = arith.constant 0 : i32
    return %c0_i32, %c0_i32_0 : i32, i32
  }
  func.func @transform_6(%arg0: i32) -> (i32, i32) {
    %c0_i32 = arith.constant 0 : i32
    %c0_i32_0 = arith.constant 0 : i32
    %c0_i32_1 = arith.constant 0 : i32
    return %c0_i32, %c0_i32_0 : i32, i32
  }
  func.func @transform_7(%arg0: i32) -> (i32, i32) {
    %c0_i32 = arith.constant 0 : i32
    %c0_i32_0 = arith.constant 0 : i32
    %c0_i32_1 = arith.constant 0 : i32
    return %c0_i32, %c0_i32_0 : i32, i32
  }
  func.func @transform_8(%arg0: i32) -> (i32, i32) {
    %c0_i32 = arith.constant 0 : i32
    %c0_i32_0 = arith.constant 0 : i32
    %c0_i32_1 = arith.constant 0 : i32
    return %c0_i32, %c0_i32_0 : i32, i32
  }
  func.func @transform_9(%arg0: i32) -> (i32, i32) {
    %c0_i32 = arith.constant 0 : i32
    %c0_i32_0 = arith.constant 0 : i32
    %c0_i32_1 = arith.constant 0 : i32
    return %c0_i32, %c0_i32_0 : i32, i32
  }
  func.func @transform_10(%arg0: i32) -> (i32, i32) {
    %c0_i32 = arith.constant 0 : i32
    %c0_i32_0 = arith.constant 0 : i32
    %c0_i32_1 = arith.constant 0 : i32
    return %c0_i32, %c0_i32_0 : i32, i32
  }
  func.func @transform_11(%arg0: i32) -> (i32, i32) {
    %c0_i32 = arith.constant 0 : i32
    %c0_i32_0 = arith.constant 0 : i32
    %c0_i32_1 = arith.constant 0 : i32
    return %c0_i32, %c0_i32_0 : i32, i32
  }
  func.func @transform_12(%arg0: i32) -> (i32, i32) {
    %c0_i32 = arith.constant 0 : i32
    %c0_i32_0 = arith.constant 0 : i32
    %c0_i32_1 = arith.constant 0 : i32
    return %c0_i32, %c0_i32_0 : i32, i32
  }
  func.func @transform_13(%arg0: i32) -> (i32, i32, i32) {
    %c0_i32 = arith.constant 0 : i32
    %c0_i32_0 = arith.constant 0 : i32
    %c0_i32_1 = arith.constant 0 : i32
    return %arg0, %c0_i32, %c0_i32_0 : i32, i32, i32
  }
}

</mosaic_0001>

<llo_original>
// kernel: gpt2_block.1
$region0: #{gpt2_block.1}
  #allocation0 [shape = 'u32[]', space=smem, size = 0x4, offset = 0x4, fixed_abs, tag = 'smem constant byte address 0x4 - core index']
  #allocation1 [shape = 'u32[144,128]{1,0:T(1,128)}', space=vmem, size = 0x12000, scoped, tag = 'internal scratch']
  %s0 = inlined_call_operand.hbm [shape: f32[2,8,128], index: 0, kind: input, shape index: {}]
  %s1 = inlined_call_operand.vmem [shape: f32[1,128], index: 1, kind: input, shape index: {}]
  %s2 = inlined_call_operand.vmem [shape: f32[1,128], index: 2, kind: input, shape index: {}]
  %s3 = inlined_call_operand.hbm [shape: bf16[128,384], index: 3, kind: input, shape index: {}]
  %s4 = inlined_call_operand.hbm [shape: f32[1,384], index: 4, kind: input, shape index: {}]
  %s5 = inlined_call_operand.hbm [shape: bf16[128,128], index: 5, kind: input, shape index: {}]
  %s6 = inlined_call_operand.hbm [shape: f32[1,128], index: 6, kind: input, shape index: {}]
  %s7 = inlined_call_operand.vmem [shape: f32[1,128], index: 7, kind: input, shape index: {}]
  %s8 = inlined_call_operand.vmem [shape: f32[1,128], index: 8, kind: input, shape index: {}]
  %s9 = inlined_call_operand.hbm [shape: bf16[128,512], index: 9, kind: input, shape index: {}]
  %s10 = inlined_call_operand.vmem [shape: f32[1,512], index: 10, kind: input, shape index: {}]
  %s11 = inlined_call_operand.hbm [shape: bf16[512,128], index: 11, kind: input, shape index: {}]
  %s12 = inlined_call_operand.hbm [shape: f32[1,128], index: 12, kind: input, shape index: {}]
  %s13 = inlined_call_operand.hbm [shape: f32[2,8,128], index: 13, kind: output, shape index: {}]
  %s14 = sld [smem:[#allocation0]]
  $region117: #{gpt2_block.1} parent=0
    _
  %s16 = ssub.s32 1, %s14
  %s17 = scalar_select 0, %s16, %s14
  $region1: #{gpt2_block.1} parent=0
    #allocation2 [shape = 'u8[8192]{0}', space=vmem, size = 0x2000, scoped, tag = 'input window, operand 0']
    #allocation3 [shape = 's32[2]{0}', space=sflag, size = 0x8, scoped, tag = 'scoped memory for gpt2_block.1']
    #allocation4 [shape = 's32[2]{0}', space=sflag, size = 0x8, scoped, tag = 'scoped memory for gpt2_block.1']
    #allocation5 [shape = 'u8[98304]{0}', space=vmem, size = 0x18000, scoped, tag = 'input window, operand 3, single buffered']
    #allocation6 [shape = 's32[1]{0}', space=sflag, size = 0x4, scoped, tag = 'scoped memory for gpt2_block.1']
    #allocation7 [shape = 'u8[1536]{0}', space=vmem, size = 0x800, scoped, tag = 'input window, operand 4, single buffered']
    #allocation8 [shape = 'u8[32768]{0}', space=vmem, size = 0x8000, scoped, tag = 'input window, operand 5, single buffered']
    #allocation9 [shape = 's32[1]{0}', space=sflag, size = 0x4, scoped, tag = 'scoped memory for gpt2_block.1']
    #allocation10 [shape = 'u8[512]{0}', space=vmem, size = 0x400, scoped, tag = 'input window, operand 6, single buffered']
    #allocation11 [shape = 'u8[131072]{0}', space=vmem, size = 0x20000, scoped, tag = 'input window, operand 9, single buffered']
    #allocation12 [shape = 's32[1]{0}', space=sflag, size = 0x4, scoped, tag = 'scoped memory for gpt2_block.1']
    #allocation13 [shape = 'u8[131072]{0}', space=vmem, size = 0x20000, scoped, tag = 'input window, operand 11, single buffered']
    #allocation14 [shape = 'u8[512]{0}', space=vmem, size = 0x400, scoped, tag = 'input window, operand 12, single buffered']
    #allocation15 [shape = 's32[1]{0}', space=sflag, size = 0x4, scoped, tag = 'scoped memory for gpt2_block.1']
    #allocation16 [shape = 'u8[8192]{0}', space=vmem, size = 0x2000, scoped, tag = 'output window, operand 0']
    %18 = vsyncpa [#allocation3], 0
    %s19 = scalar_lea.sflag [#allocation3], 1
    %20 = vsyncpa %s19, 0
    %21 = vsyncpa [#allocation6], 0
    %22 = vsyncpa [#allocation9], 0
    %23 = vsyncpa [#allocation12], 0
    %24 = vsyncpa [#allocation15], 0
    %25 = vsyncpa [#allocation4], 0
    %s26 = scalar_lea.sflag [#allocation4], 1
    %27 = vsyncpa %s26, 0
    loop: start=0, step=1, limit=4
    $region2: #{gpt2_block.1} parent=1 // loop_pre_header
      _
    $region3: #{gpt2_block.1} parent=1 // loop_header
      %s29 = sphi 0, %s33
      %p30 = scmp.ge.s32.totalorder %s29, 4
      %s39 = sphi 0, %s41
      %s42 = sphi 0, %s39
      %s43 = sphi 0, %s42
      %s59 = sphi 0, %s43
      %s63 = sphi 0, %s63
      %s65 = sphi 0, %s63
      %s66 = sphi 0, %s65
      %s80 = sphi 0, %s66
      %s84 = sphi 0, %s84
      %s86 = sphi 0, %s84
      %s87 = sphi 0, %s86
      %s101 = sphi 0, %s87
      %s105 = sphi 0, %s105
      %s107 = sphi 0, %s105
      %s108 = sphi 0, %s107
      %s122 = sphi 0, %s108
      %s126 = sphi 0, %s126
      %s128 = sphi 0, %s126
      %s129 = sphi 0, %s128
      %s143 = sphi 0, %s129
      %s147 = sphi 0, %s147
      %s149 = sphi 0, %s147
      %s150 = sphi 0, %s149
      %s164 = sphi 0, %s150
      %s168 = sphi 0, %s168
      %s170 = sphi 0, %s168
      %s171 = sphi 0, %s170
      %s185 = sphi 0, %s171
      %s189 = sphi 0, %s189
      %s191 = sphi 0, %s189
      %s192 = sphi 0, %s191
      %s206 = sphi 0, %s192
      %s210 = sphi 0, %s210
      %s212 = sphi 0, %s210
      %s213 = sphi 0, %s212
      %s227 = sphi 0, %s213
      %s231 = sphi 0, %s231
      %s233 = sphi 0, %s231
      %s234 = sphi 0, %s233
      %s248 = sphi 0, %s234
      %s252 = sphi 0, %s252
      %s254 = sphi 0, %s252
      %s255 = sphi 0, %s254
      %s269 = sphi 0, %s255
      %s273 = sphi 0, %s273
      %s275 = sphi 0, %s273
      %s276 = sphi 0, %s275
      %s290 = sphi 0, %s276
      %s294 = sphi 0, %s294
      %s296 = sphi 0, %s294
      %s297 = sphi 0, %s296
      %s311 = sphi 0, %s297
      %s317 = sphi 0, %s319
      %s320 = sphi 0, %s317
      %s321 = sphi 0, %s320
      %s337 = sphi 0, %s321
    $region4: #{gpt2_block.1} parent=1 // loop_header_branch
      %32 = sbr.rel (%p30) target = $region8
    $region5: #{gpt2_block.1} parent=1 // loop_body
      %s34 = ssub.s32 %s29, 1
      %s35 = ssub.s32 %s29, 2
      %s36 = sadd.s32 %s29, 1
      %s37 = ssub.s32 %s29, %s36
      %p38 = scmp.eq.s32.totalorder %s37, 0
      %s40 = sadd.s32 %s39, 1
      %s41 = scalar_select %p38, %s39, %s40
      %p44 = pneg %p38
      %p45 = scmp.eq.s32.totalorder %s29, 1
      %p46 = por %p44, %p45
      %p47 = scmp.ne.s32.totalorder %s39, %s42
      %p48 = scmp.eq.s32.totalorder %s29, 0
      %p49 = por %p47, %p48
      %p50 = scmp.ne.s32.totalorder %s39, %s42
      %p51 = scmp.eq.s32.totalorder %s34, 1
      %p52 = por %p50, %p51
      %p53 = scmp.ne.s32.totalorder %s42, %s43
      %p54 = scmp.eq.s32.totalorder %s34, 0
      %p55 = por %p53, %p54
      %p56 = scmp.ne.s32.totalorder %s42, %s43
      %p57 = scmp.eq.s32.totalorder %s35, 1
      %p58 = por %p56, %p57
      %p60 = scmp.ne.s32.totalorder %s43, %s59
      %p61 = scmp.eq.s32.totalorder %s35, 0
      %p62 = por %p60, %p61
      %s64 = sadd.s32 %s63, 1
      %p67 = scmp.eq.s32.totalorder %s29, 1
      %p68 = scmp.ne.s32.totalorder %s63, %s65
      %p69 = scmp.eq.s32.totalorder %s29, 0
      %p70 = por %p68, %p69
      %p71 = scmp.ne.s32.totalorder %s63, %s65
      %p72 = scmp.eq.s32.totalorder %s34, 1
      %p73 = por %p71, %p72
      %p74 = scmp.ne.s32.totalorder %s65, %s66
      %p75 = scmp.eq.s32.totalorder %s34, 0
      %p76 = por %p74, %p75
      %p77 = scmp.ne.s32.totalorder %s65, %s66
      %p78 = scmp.eq.s32.totalorder %s35, 1
      %p79 = por %p77, %p78
      %p81 = scmp.ne.s32.totalorder %s66, %s80
      %p82 = scmp.eq.s32.totalorder %s35, 0
      %p83 = por %p81, %p82
      %s85 = sadd.s32 %s84, 1
      %p88 = scmp.eq.s32.totalorder %s29, 1
      %p89 = scmp.ne.s32.totalorder %s84, %s86
      %p90 = scmp.eq.s32.totalorder %s29, 0
      %p91 = por %p89, %p90
      %p92 = scmp.ne.s32.totalorder %s84, %s86
      %p93 = scmp.eq.s32.totalorder %s34, 1
      %p94 = por %p92, %p93
      %p95 = scmp.ne.s32.totalorder %s86, %s87
      %p96 = scmp.eq.s32.totalorder %s34, 0
      %p97 = por %p95, %p96
      %p98 = scmp.ne.s32.totalorder %s86, %s87
      %p99 = scmp.eq.s32.totalorder %s35, 1
      %p100 = por %p98, %p99
      %p102 = scmp.ne.s32.totalorder %s87, %s101
      %p103 = scmp.eq.s32.totalorder %s35, 0
      %p104 = por %p102, %p103
      %s106 = sadd.s32 %s105, 1
      %p109 = scmp.eq.s32.totalorder %s29, 1
      %p110 = scmp.ne.s32.totalorder %s105, %s107
      %p111 = scmp.eq.s32.totalorder %s29, 0
      %p112 = por %p110, %p111
      %p113 = scmp.ne.s32.totalorder %s105, %s107
      %p114 = scmp.eq.s32.totalorder %s34, 1
      %p115 = por %p113, %p114
      %p116 = scmp.ne.s32.totalorder %s107, %s108
      %p117 = scmp.eq.s32.totalorder %s34, 0
      %p118 = por %p116, %p117
      %p119 = scmp.ne.s32.totalorder %s107, %s108
      %p120 = scmp.eq.s32.totalorder %s35, 1
      %p121 = por %p119, %p120
      %p123 = scmp.ne.s32.totalorder %s108, %s122
      %p124 = scmp.eq.s32.totalorder %s35, 0
      %p125 = por %p123, %p124
      %s127 = sadd.s32 %s126, 1
      %p130 = scmp.eq.s32.totalorder %s29, 1
      %p131 = scmp.ne.s32.totalorder %s126, %s128
      %p132 = scmp.eq.s32.totalorder %s29, 0
      %p133 = por %p131, %p132
      %p134 = scmp.ne.s32.totalorder %s126, %s128
      %p135 = scmp.eq.s32.totalorder %s34, 1
      %p136 = por %p134, %p135
      %p137 = scmp.ne.s32.totalorder %s128, %s129
      %p138 = scmp.eq.s32.totalorder %s34, 0
      %p139 = por %p137, %p138
      %p140 = scmp.ne.s32.totalorder %s128, %s129
      %p141 = scmp.eq.s32.totalorder %s35, 1
      %p142 = por %p140, %p141
      %p144 = scmp.ne.s32.totalorder %s129, %s143
      %p145 = scmp.eq.s32.totalorder %s35, 0
      %p146 = por %p144, %p145
      %s148 = sadd.s32 %s147, 1
      %p151 = scmp.eq.s32.totalorder %s29, 1
      %p152 = scmp.ne.s32.totalorder %s147, %s149
      %p153 = scmp.eq.s32.totalorder %s29, 0
      %p154 = por %p152, %p153
      %p155 = scmp.ne.s32.totalorder %s147, %s149
      %p156 = scmp.eq.s32.totalorder %s34, 1
      %p157 = por %p155, %p156
      %p158 = scmp.ne.s32.totalorder %s149, %s150
      %p159 = scmp.eq.s32.totalorder %s34, 0
      %p160 = por %p158, %p159
      %p161 = scmp.ne.s32.totalorder %s149, %s150
      %p162 = scmp.eq.s32.totalorder %s35, 1
      %p163 = por %p161, %p162
      %p165 = scmp.ne.s32.totalorder %s150, %s164
      %p166 = scmp.eq.s32.totalorder %s35, 0
      %p167 = por %p165, %p166
      %s169 = sadd.s32 %s168, 1
      %p172 = scmp.eq.s32.totalorder %s29, 1
      %p173 = scmp.ne.s32.totalorder %s168, %s170
      %p174 = scmp.eq.s32.totalorder %s29, 0
      %p175 = por %p173, %p174
      %p176 = scmp.ne.s32.totalorder %s168, %s170
      %p177 = scmp.eq.s32.totalorder %s34, 1
      %p178 = por %p176, %p177
      %p179 = scmp.ne.s32.totalorder %s170, %s171
      %p180 = scmp.eq.s32.totalorder %s34, 0
      %p181 = por %p179, %p180
      %p182 = scmp.ne.s32.totalorder %s170, %s171
      %p183 = scmp.eq.s32.totalorder %s35, 1
      %p184 = por %p182, %p183
      %p186 = scmp.ne.s32.totalorder %s171, %s185
      %p187 = scmp.eq.s32.totalorder %s35, 0
      %p188 = por %p186, %p187
      %s190 = sadd.s32 %s189, 1
      %p193 = scmp.eq.s32.totalorder %s29, 1
      %p194 = scmp.ne.s32.totalorder %s189, %s191
      %p195 = scmp.eq.s32.totalorder %s29, 0
      %p196 = por %p194, %p195
      %p197 = scmp.ne.s32.totalorder %s189, %s191
      %p198 = scmp.eq.s32.totalorder %s34, 1
      %p199 = por %p197, %p198
      %p200 = scmp.ne.s32.totalorder %s191, %s192
      %p201 = scmp.eq.s32.totalorder %s34, 0
      %p202 = por %p200, %p201
      %p203 = scmp.ne.s32.totalorder %s191, %s192
      %p204 = scmp.eq.s32.totalorder %s35, 1
      %p205 = por %p203, %p204
      %p207 = scmp.ne.s32.totalorder %s192, %s206
      %p208 = scmp.eq.s32.totalorder %s35, 0
      %p209 = por %p207, %p208
      %s211 = sadd.s32 %s210, 1
      %p214 = scmp.eq.s32.totalorder %s29, 1
      %p215 = scmp.ne.s32.totalorder %s210, %s212
      %p216 = scmp.eq.s32.totalorder %s29, 0
      %p217 = por %p215, %p216
      %p218 = scmp.ne.s32.totalorder %s210, %s212
      %p219 = scmp.eq.s32.totalorder %s34, 1
      %p220 = por %p218, %p219
      %p221 = scmp.ne.s32.totalorder %s212, %s213
      %p222 = scmp.eq.s32.totalorder %s34, 0
      %p223 = por %p221, %p222
      %p224 = scmp.ne.s32.totalorder %s212, %s213
      %p225 = scmp.eq.s32.totalorder %s35, 1
      %p226 = por %p224, %p225
      %p228 = scmp.ne.s32.totalorder %s213, %s227
      %p229 = scmp.eq.s32.totalorder %s35, 0
      %p230 = por %p228, %p229
      %s232 = sadd.s32 %s231, 1
      %p235 = scmp.eq.s32.totalorder %s29, 1
      %p236 = scmp.ne.s32.totalorder %s231, %s233
      %p237 = scmp.eq.s32.totalorder %s29, 0
      %p238 = por %p236, %p237
      %p239 = scmp.ne.s32.totalorder %s231, %s233
      %p240 = scmp.eq.s32.totalorder %s34, 1
      %p241 = por %p239, %p240
      %p242 = scmp.ne.s32.totalorder %s233, %s234
      %p243 = scmp.eq.s32.totalorder %s34, 0
      %p244 = por %p242, %p243
      %p245 = scmp.ne.s32.totalorder %s233, %s234
      %p246 = scmp.eq.s32.totalorder %s35, 1
      %p247 = por %p245, %p246
      %p249 = scmp.ne.s32.totalorder %s234, %s248
      %p250 = scmp.eq.s32.totalorder %s35, 0
      %p251 = por %p249, %p250
      %s253 = sadd.s32 %s252, 1
      %p256 = scmp.eq.s32.totalorder %s29, 1
      %p257 = scmp.ne.s32.totalorder %s252, %s254
      %p258 = scmp.eq.s32.totalorder %s29, 0
      %p259 = por %p257, %p258
      %p260 = scmp.ne.s32.totalorder %s252, %s254
      %p261 = scmp.eq.s32.totalorder %s34, 1
      %p262 = por %p260, %p261
      %p263 = scmp.ne.s32.totalorder %s254, %s255
      %p264 = scmp.eq.s32.totalorder %s34, 0
      %p265 = por %p263, %p264
      %p266 = scmp.ne.s32.totalorder %s254, %s255
      %p267 = scmp.eq.s32.totalorder %s35, 1
      %p268 = por %p266, %p267
      %p270 = scmp.ne.s32.totalorder %s255, %s269
      %p271 = scmp.eq.s32.totalorder %s35, 0
      %p272 = por %p270, %p271
      %s274 = sadd.s32 %s273, 1
      %p277 = scmp.eq.s32.totalorder %s29, 1
      %p278 = scmp.ne.s32.totalorder %s273, %s275
      %p279 = scmp.eq.s32.totalorder %s29, 0
      %p280 = por %p278, %p279
      %p281 = scmp.ne.s32.totalorder %s273, %s275
      %p282 = scmp.eq.s32.totalorder %s34, 1
      %p283 = por %p281, %p282
      %p284 = scmp.ne.s32.totalorder %s275, %s276
      %p285 = scmp.eq.s32.totalorder %s34, 0
      %p286 = por %p284, %p285
      %p287 = scmp.ne.s32.totalorder %s275, %s276
      %p288 = scmp.eq.s32.totalorder %s35, 1
      %p289 = por %p287, %p288
      %p291 = scmp.ne.s32.totalorder %s276, %s290
      %p292 = scmp.eq.s32.totalorder %s35, 0
      %p293 = por %p291, %p292
      %s295 = sadd.s32 %s294, 1
      %p298 = scmp.eq.s32.totalorder %s29, 1
      %p299 = scmp.ne.s32.totalorder %s294, %s296
      %p300 = scmp.eq.s32.totalorder %s29, 0
      %p301 = por %p299, %p300
      %p302 = scmp.ne.s32.totalorder %s294, %s296
      %p303 = scmp.eq.s32.totalorder %s34, 1
      %p304 = por %p302, %p303
      %p305 = scmp.ne.s32.totalorder %s296, %s297
      %p306 = scmp.eq.s32.totalorder %s34, 0
      %p307 = por %p305, %p306
      %p308 = scmp.ne.s32.totalorder %s296, %s297
      %p309 = scmp.eq.s32.totalorder %s35, 1
      %p310 = por %p308, %p309
      %p312 = scmp.ne.s32.totalorder %s297, %s311
      %p313 = scmp.eq.s32.totalorder %s35, 0
      %p314 = por %p312, %p313
      %s315 = ssub.s32 %s29, %s36
      %p316 = scmp.eq.s32.totalorder %s315, 0
      %s318 = sadd.s32 %s317, 1
      %s319 = scalar_select %p316, %s317, %s318
      %p322 = pneg %p316
      %p323 = scmp.eq.s32.totalorder %s29, 1
      %p324 = por %p322, %p323
      %p325 = scmp.ne.s32.totalorder %s317, %s320
      %p326 = scmp.eq.s32.totalorder %s29, 0
      %p327 = por %p325, %p326
      %p328 = scmp.ne.s32.totalorder %s317, %s320
      %p329 = scmp.eq.s32.totalorder %s34, 1
      %p330 = por %p328, %p329
      %p331 = scmp.ne.s32.totalorder %s320, %s321
      %p332 = scmp.eq.s32.totalorder %s34, 0
      %p333 = por %p331, %p332
      %p334 = scmp.ne.s32.totalorder %s320, %s321
      %p335 = scmp.eq.s32.totalorder %s35, 1
      %p336 = por %p334, %p335
      %p338 = scmp.ne.s32.totalorder %s321, %s337
      %p339 = scmp.eq.s32.totalorder %s35, 0
      %p340 = por %p338, %p339
      %p341 = scmp.le.s32.totalorder 1, %s29
      %p342 = scmp.lt.s32.totalorder %s29, 3
      %p343 = pnand %p341, %p342
      %p344 = pneg %p343
      // Predicated region
      $region9: #{gpt2_block.1} parent=5 // pred_check
        _
      $region10: #{gpt2_block.1} parent=5 // pred_check_branch
        %346 = sbr.rel (%p343) target = $region12
      $region11: #{gpt2_block.1} parent=5 // pred_region
        %s347 = ssub.s32 %s29, 1
        // Predicated region
        $region13: #{gpt2_block.1} parent=11 // pred_check
          %p348 = pneg %p76
        $region14: #{gpt2_block.1} parent=11 // pred_check_branch
          %350 = sbr.rel (%p348) target = $region16
        $region15: #{gpt2_block.1} parent=11 // pred_region
          _
        $region16: #{gpt2_block.1} parent=11 // pred_fallthru
          _
        // Predicated region
        $region17: #{gpt2_block.1} parent=11 // pred_check
          %p351 = pneg %p97
        $region18: #{gpt2_block.1} parent=11 // pred_check_branch
          %353 = sbr.rel (%p351) target = $region20
        $region19: #{gpt2_block.1} parent=11 // pred_region
          _
        $region20: #{gpt2_block.1} parent=11 // pred_fallthru
          _
        // Predicated region
        $region21: #{gpt2_block.1} parent=11 // pred_check
          %p354 = pneg %p118
        $region22: #{gpt2_block.1} parent=11 // pred_check_branch
          %356 = sbr.rel (%p354) target = $region24
        $region23: #{gpt2_block.1} parent=11 // pred_region
          %s358 = ssub.s32 3072, 3072
          %359 = vsyncadd [#allocation6], %s358
          %s360 = sshll.u32 [#allocation5], 4
          %s361 = int_to_ptr.vmem [resolvable:$true] %s360
          %366 = dma.hbm_to_vmem [thread:$0]  %s3, 3072, %s361, [#allocation6], 192, 192, 12
        $region24: #{gpt2_block.1} parent=11 // pred_fallthru
          _
        // Predicated region
        $region25: #{gpt2_block.1} parent=11 // pred_check
          %p367 = pneg %p139
        $region26: #{gpt2_block.1} parent=11 // pred_check_branch
          %369 = sbr.rel (%p367) target = $region28
        $region27: #{gpt2_block.1} parent=11 // pred_region
          %s371 = ssub.s32 48, 48
          %372 = vsyncadd [#allocation6], %s371
          %s374 = sshll.u32 [#allocation7], 4
          %s375 = int_to_ptr.vmem [resolvable:$true] %s374
          %377 = dma.hbm_to_vmem [thread:$0]  %s4, 48, %s375, [#allocation6]
        $region28: #{gpt2_block.1} parent=11 // pred_fallthru
          _
        // Predicated region
        $region29: #{gpt2_block.1} parent=11 // pred_check
          %p378 = pneg %p160
        $region30: #{gpt2_block.1} parent=11 // pred_check_branch
          %380 = sbr.rel (%p378) target = $region32
        $region31: #{gpt2_block.1} parent=11 // pred_region
          %s382 = ssub.s32 1024, 1024
          %383 = vsyncadd [#allocation9], %s382
          %s384 = sshll.u32 [#allocation8], 4
          %s385 = int_to_ptr.vmem [resolvable:$true] %s384
          %390 = dma.hbm_to_vmem [thread:$0]  %s5, 1024, %s385, [#allocation9], 64, 64, 4
        $region32: #{gpt2_block.1} parent=11 // pred_fallthru
          _
        // Predicated region
        $region33: #{gpt2_block.1} parent=11 // pred_check
          %p391 = pneg %p181
        $region34: #{gpt2_block.1} parent=11 // pred_check_branch
          %393 = sbr.rel (%p391) target = $region36
        $region35: #{gpt2_block.1} parent=11 // pred_region
          %s395 = ssub.s32 16, 16
          %396 = vsyncadd [#allocation9], %s395
          %s398 = sshll.u32 [#allocation10], 4
          %s399 = int_to_ptr.vmem [resolvable:$true] %s398
          %401 = dma.hbm_to_vmem [thread:$0]  %s6, 16, %s399, [#allocation9]
        $region36: #{gpt2_block.1} parent=11 // pred_fallthru
          _
        // Predicated region
        $region37: #{gpt2_block.1} parent=11 // pred_check
          %p402 = pneg %p202
        $region38: #{gpt2_block.1} parent=11 // pred_check_branch
          %404 = sbr.rel (%p402) target = $region40
        $region39: #{gpt2_block.1} parent=11 // pred_region
          _
        $region40: #{gpt2_block.1} parent=11 // pred_fallthru
          _
        // Predicated region
        $region41: #{gpt2_block.1} parent=11 // pred_check
          %p405 = pneg %p223
        $region42: #{gpt2_block.1} parent=11 // pred_check_branch
          %407 = sbr.rel (%p405) target = $region44
        $region43: #{gpt2_block.1} parent=11 // pred_region
          _
        $region44: #{gpt2_block.1} parent=11 // pred_fallthru
          _
        // Predicated region
        $region45: #{gpt2_block.1} parent=11 // pred_check
          %p408 = pneg %p244
        $region46: #{gpt2_block.1} parent=11 // pred_check_branch
          %410 = sbr.rel (%p408) target = $region48
        $region47: #{gpt2_block.1} parent=11 // pred_region
          %s412 = ssub.s32 4096, 4096
          %413 = vsyncadd [#allocation12], %s412
          %s414 = sshll.u32 [#allocation11], 4
          %s415 = int_to_ptr.vmem [resolvable:$true] %s414
          %420 = dma.hbm_to_vmem [thread:$0]  %s9, 4096, %s415, [#allocation12], 256, 256, 16
        $region48: #{gpt2_block.1} parent=11 // pred_fallthru
          _
        // Predicated region
        $region49: #{gpt2_block.1} parent=11 // pred_check
          %p421 = pneg %p265
        $region50: #{gpt2_block.1} parent=11 // pred_check_branch
          %423 = sbr.rel (%p421) target = $region52
        $region51: #{gpt2_block.1} parent=11 // pred_region
          _
        $region52: #{gpt2_block.1} parent=11 // pred_fallthru
          _
        // Predicated region
        $region53: #{gpt2_block.1} parent=11 // pred_check
          %p424 = pneg %p286
        $region54: #{gpt2_block.1} parent=11 // pred_check_branch
          %426 = sbr.rel (%p424) target = $region56
        $region55: #{gpt2_block.1} parent=11 // pred_region
          %s428 = ssub.s32 4096, 4096
          %429 = vsyncadd [#allocation12], %s428
          %s430 = sshll.u32 [#allocation13], 4
          %s431 = int_to_ptr.vmem [resolvable:$true] %s430
          %436 = dma.hbm_to_vmem [thread:$0]  %s11, 4096, %s431, [#allocation12], 64, 64, 4
        $region56: #{gpt2_block.1} parent=11 // pred_fallthru
          _
        // Predicated region
        $region57: #{gpt2_block.1} parent=11 // pred_check
          %p437 = pneg %p307
        $region58: #{gpt2_block.1} parent=11 // pred_check_branch
          %439 = sbr.rel (%p437) target = $region60
        $region59: #{gpt2_block.1} parent=11 // pred_region
          %s441 = ssub.s32 16, 16
          %442 = vsyncadd [#allocation15], %s441
          %s444 = sshll.u32 [#allocation14], 4
          %s445 = int_to_ptr.vmem [resolvable:$true] %s444
          %447 = dma.hbm_to_vmem [thread:$0]  %s12, 16, %s445, [#allocation15]
        $region60: #{gpt2_block.1} parent=11 // pred_fallthru
          _
      $region12: #{gpt2_block.1} parent=5 // pred_fallthru
        _
      %p448 = scmp.lt.s32.totalorder %s29, 2
      // Predicated region
      $region61: #{gpt2_block.1} parent=5 // pred_check
        %p449 = pneg %p448
      $region62: #{gpt2_block.1} parent=5 // pred_check_branch
        %451 = sbr.rel (%p449) target = $region64
      $region63: #{gpt2_block.1} parent=5 // pred_region
        // Predicated region
        $region65: #{gpt2_block.1} parent=63 // pred_check
          %p452 = pneg %p49
        $region66: #{gpt2_block.1} parent=63 // pred_check_branch
          %454 = sbr.rel (%p452) target = $region68
        $region67: #{gpt2_block.1} parent=63 // pred_region
          %s455 = sand.u32 %s39, 1
          %s456 = scalar_lea.sflag [#allocation3], %s455
          %s457 = sand.u32 %s39, 1
          %s458 = smul.addr %s457, 8
          %s459 = scalar_lea.vmem [#allocation2], %s458
          %s461 = ssub.s32 128, 128
          %462 = vsyncadd %s456, %s461
          %s463 = smul.addr %s29, 128
          %s464 = scalar_lea.hbm %s0, %s463
          %s466 = sshll.u32 %s459, 4
          %s467 = int_to_ptr.vmem [resolvable:$true] %s466
          %469 = dma.hbm_to_vmem [thread:$0]  %s464, 128, %s467, %s456
        $region68: #{gpt2_block.1} parent=63 // pred_fallthru
          _
      $region64: #{gpt2_block.1} parent=5 // pred_fallthru
        _
      %p470 = scmp.le.s32.totalorder 1, %s29
      %p471 = scmp.lt.s32.totalorder %s29, 3
      %p472 = pnand %p470, %p471
      %p473 = pneg %p472
      // Predicated region
      $region69: #{gpt2_block.1} parent=5 // pred_check
        _
      $region70: #{gpt2_block.1} parent=5 // pred_check_branch
        %475 = sbr.rel (%p472) target = $region72
      $region71: #{gpt2_block.1} parent=5 // pred_region
        %s476 = ssub.s32 %s29, 1
        %s477 = sand.u32 %s42, 1
        %s478 = scalar_lea.sflag [#allocation3], %s477
        %s479 = sand.u32 %s42, 1
        %s480 = smul.addr %s479, 8
        %s481 = scalar_lea.vmem [#allocation2], %s480
        // Predicated region
        $region73: #{gpt2_block.1} parent=71 // pred_check
          %p482 = pneg %p55
        $region74: #{gpt2_block.1} parent=71 // pred_check_branch
          %484 = sbr.rel (%p482) target = $region76
        $region75: #{gpt2_block.1} parent=71 // pred_region
          %485 = dma.done %s478, 128
        $region76: #{gpt2_block.1} parent=71 // pred_fallthru
          _
        // Predicated region
        $region77: #{gpt2_block.1} parent=71 // pred_check
          %p486 = pneg %p118
        $region78: #{gpt2_block.1} parent=71 // pred_check_branch
          %488 = sbr.rel (%p486) target = $region80
        $region79: #{gpt2_block.1} parent=71 // pred_region
          %489 = dma.done [#allocation6], 3072
        $region80: #{gpt2_block.1} parent=71 // pred_fallthru
          _
        // Predicated region
        $region81: #{gpt2_block.1} parent=71 // pred_check
          %p490 = pneg %p139
        $region82: #{gpt2_block.1} parent=71 // pred_check_branch
          %492 = sbr.rel (%p490) target = $region84
        $region83: #{gpt2_block.1} parent=71 // pred_region
          %493 = dma.done [#allocation6], 48
        $region84: #{gpt2_block.1} parent=71 // pred_fallthru
          _
        // Predicated region
        $region85: #{gpt2_block.1} parent=71 // pred_check
          %p494 = pneg %p160
        $region86: #{gpt2_block.1} parent=71 // pred_check_branch
          %496 = sbr.rel (%p494) target = $region88
        $region87: #{gpt2_block.1} parent=71 // pred_region
          %497 = dma.done [#allocation9], 1024
        $region88: #{gpt2_block.1} parent=71 // pred_fallthru
          _
        // Predicated region
        $region89: #{gpt2_block.1} parent=71 // pred_check
          %p498 = pneg %p181
        $region90: #{gpt2_block.1} parent=71 // pred_check_branch
          %500 = sbr.rel (%p498) target = $region92
        $region91: #{gpt2_block.1} parent=71 // pred_region
          %501 = dma.done [#allocation9], 16
        $region92: #{gpt2_block.1} parent=71 // pred_fallthru
          _
        // Predicated region
        $region93: #{gpt2_block.1} parent=71 // pred_check
          %p502 = pneg %p244
        $region94: #{gpt2_block.1} parent=71 // pred_check_branch
          %504 = sbr.rel (%p502) target = $region96
        $region95: #{gpt2_block.1} parent=71 // pred_region
          %505 = dma.done [#allocation12], 4096
        $region96: #{gpt2_block.1} parent=71 // pred_fallthru
          _
        // Predicated region
        $region97: #{gpt2_block.1} parent=71 // pred_check
          %p506 = pneg %p286
        $region98: #{gpt2_block.1} parent=71 // pred_check_branch
          %508 = sbr.rel (%p506) target = $region100
        $region99: #{gpt2_block.1} parent=71 // pred_region
          %509 = dma.done [#allocation12], 4096
        $region100: #{gpt2_block.1} parent=71 // pred_fallthru
          _
        // Predicated region
        $region101: #{gpt2_block.1} parent=71 // pred_check
          %p510 = pneg %p307
        $region102: #{gpt2_block.1} parent=71 // pred_check_branch
          %512 = sbr.rel (%p510) target = $region104
        $region103: #{gpt2_block.1} parent=71 // pred_region
          %513 = dma.done [#allocation15], 16
        $region104: #{gpt2_block.1} parent=71 // pred_fallthru
          _
        %s514 = sand.u32 %s42, 1
        %s515 = scalar_lea.sflag [#allocation3], %s514
        %s516 = sand.u32 %s42, 1
        %s517 = smul.addr %s516, 8
        %s518 = scalar_lea.vmem [#allocation2], %s517
        %p519 = pneg %p55
        %p520 = pneg %p52
        %p521 = pneg %p76
        %p522 = pneg %p73
        %p523 = pneg %p97
        %p524 = pneg %p94
        %p525 = pneg %p118
        %p526 = pneg %p115
        %p527 = pneg %p139
        %p528 = pneg %p136
        %p529 = pneg %p160
        %p530 = pneg %p157
        %p531 = pneg %p181
        %p532 = pneg %p178
        %p533 = pneg %p202
        %p534 = pneg %p199
        %p535 = pneg %p223
        %p536 = pneg %p220
        %p537 = pneg %p244
        %p538 = pneg %p241
        %p539 = pneg %p265
        %p540 = pneg %p262
        %p541 = pneg %p286
        %p542 = pneg %p283
        %p543 = pneg %p307
        %p544 = pneg %p304
        %p545 = pneg %p333
        %p546 = pneg %p330
        %s547 = sand.u32 %s320, 1
        %s548 = scalar_lea.sflag [#allocation4], %s547
        %s549 = sand.u32 %s320, 1
        %s550 = smul.addr %s549, 8
        %s551 = scalar_lea.vmem [#allocation16], %s550
        %v553 = vld [vmem:[%s481] sm:$0xff]
        %v554 = vld [vmem:[%s1] sm:$0x1]
        %v555 = vld [vmem:[%s2] sm:$0x1]
        %556 = vadd.xlane.f32.xlu0 %v553
        %v557 = vpop.xlane.xlu0 %556
        %v558 = vrcp.pop 128.0
        %v559 = vmul.f32 %v557, %v558
        %v560 = vsub.f32 %v553, %v559
        %v561 = vmul.f32 %v560, %v560
        %562 = vadd.xlane.f32.xlu0 %v561
        %v563 = vpop.xlane.xlu0 %562
        %v564 = vmul.f32 %v563, %v558
        %v565 = vadd.f32 %v564, 1e-05
        %v566 = vrsqrt.pop %v565
        %v567 = vmul.f32 %v560, %v566
        %v569 = vlaneseq
        %v570 = vshrl.u32 %v569, 7
        %v571 = vsub.s32 0, %v570
        %v572 = vrot.slane %v554, %v571
        %v574 = vmul.f32 %v567, %v572
        %v576 = vlaneseq
        %v577 = vshrl.u32 %v576, 7
        %v578 = vsub.s32 0, %v577
        %v579 = vrot.slane %v555, %v578
        %v581 = vadd.f32 %v574, %v579
        %v582 = vpack.c.bf16 %v581, %v581
        %v583 = vld [vmem:[#allocation5] sm:$0xff]
        %v584 = vld [vmem:[#allocation5 + $0x8] sm:$0xf]
        %v585 = vld [vmem:[#allocation5 + $0xc] sm:$0xff]
        %v586 = vld [vmem:[#allocation5 + $0x14] sm:$0xf]
        %v587 = vld [vmem:[#allocation5 + $0x18] sm:$0xff]
        %v588 = vld [vmem:[#allocation5 + $0x20] sm:$0xf]
        %v589 = vld [vmem:[#allocation5 + $0x24] sm:$0xff]
        %v590 = vld [vmem:[#allocation5 + $0x2c] sm:$0xf]
        %v591 = vld [vmem:[#allocation5 + $0x30] sm:$0xff]
        %v592 = vld [vmem:[#allocation5 + $0x38] sm:$0xf]
        %v593 = vld [vmem:[#allocation5 + $0x3c] sm:$0xff]
        %v594 = vld [vmem:[#allocation5 + $0x44] sm:$0xf]
        %v595 = vld [vmem:[#allocation5 + $0x48] sm:$0xff]
        %v596 = vld [vmem:[#allocation5 + $0x50] sm:$0xf]
        %v597 = vld [vmem:[#allocation5 + $0x54] sm:$0xff]
        %v598 = vld [vmem:[#allocation5 + $0x5c] sm:$0xf]
        %v599 = vld [vmem:[#allocation5 + $0x60] sm:$0xff]
        %v600 = vld [vmem:[#allocation5 + $0x68] sm:$0xf]
        %v601 = vld [vmem:[#allocation5 + $0x6c] sm:$0xff]
        %v602 = vld [vmem:[#allocation5 + $0x74] sm:$0xf]
        %v603 = vld [vmem:[#allocation5 + $0x78] sm:$0xff]
        %v604 = vld [vmem:[#allocation5 + $0x80] sm:$0xf]
        %v605 = vld [vmem:[#allocation5 + $0x84] sm:$0xff]
        %v606 = vld [vmem:[#allocation5 + $0x8c] sm:$0xf]
        %v607 = vld [vmem:[#allocation5 + $0x90] sm:$0xff]
        %v608 = vld [vmem:[#allocation5 + $0x98] sm:$0xf]
        %v609 = vld [vmem:[#allocation5 + $0x9c] sm:$0xff]
        %v610 = vld [vmem:[#allocation5 + $0xa4] sm:$0xf]
        %v611 = vld [vmem:[#allocation5 + $0xa8] sm:$0xff]
        %v612 = vld [vmem:[#allocation5 + $0xb0] sm:$0xf]
        %v613 = vld [vmem:[#allocation5 + $0xb4] sm:$0xff]
        %v614 = vld [vmem:[#allocation5 + $0xbc] sm:$0xf]
        %v615 = vld [vmem:[#allocation7] sm:$0x7]
        %v617 = vlaneseq
        %v618 = vshrl.u32 %v617, 7
        %v619 = vsub.s32 0, %v618
        %v620 = vrot.slane %v615, %v619
        %v621 = vlaneseq
        %v622 = vshrl.u32 %v621, 7
        %v623 = vsub.s32 1, %v622
        %v624 = vrot.slane %v615, %v623
        %v625 = vlaneseq
        %v626 = vshrl.u32 %v625, 7
        %v627 = vsub.s32 2, %v626
        %v628 = vrot.slane %v615, %v627
        %v664 = vunpack.c.l.b16 %v583
        %v665 = vunpack.c.h.b16 %v583
        %v666 = vunpack.c.l.b16 %v584
        %v667 = vunpack.c.l.b16 %v585
        %v668 = vunpack.c.h.b16 %v585
        %v669 = vunpack.c.l.b16 %v586
        %v670 = vunpack.c.l.b16 %v587
        %v671 = vunpack.c.h.b16 %v587
        %v672 = vunpack.c.l.b16 %v588
        %v673 = vunpack.c.l.b16 %v589
        %v674 = vunpack.c.h.b16 %v589
        %v675 = vunpack.c.l.b16 %v590
        %v676 = vunpack.c.l.b16 %v591
        %v677 = vunpack.c.h.b16 %v591
        %v678 = vunpack.c.l.b16 %v592
        %v679 = vunpack.c.l.b16 %v593
        %v680 = vunpack.c.h.b16 %v593
        %v681 = vunpack.c.l.b16 %v594
        %v682 = vunpack.c.l.b16 %v595
        %v683 = vunpack.c.h.b16 %v595
        %v684 = vunpack.c.l.b16 %v596
        %v685 = vunpack.c.l.b16 %v597
        %v686 = vunpack.c.h.b16 %v597
        %v687 = vunpack.c.l.b16 %v598
        %v688 = vunpack.c.l.b16 %v599
        %v689 = vunpack.c.h.b16 %v599
        %v690 = vunpack.c.l.b16 %v600
        %v691 = vunpack.c.l.b16 %v601
        %v692 = vunpack.c.h.b16 %v601
        %v693 = vunpack.c.l.b16 %v602
        %v694 = vunpack.c.l.b16 %v603
        %v695 = vunpack.c.h.b16 %v603
        %v696 = vunpack.c.l.b16 %v604
        %v697 = vunpack.c.l.b16 %v605
        %v698 = vunpack.c.h.b16 %v605
        %v699 = vunpack.c.l.b16 %v606
        %v700 = vunpack.c.l.b16 %v607
        %v701 = vunpack.c.h.b16 %v607
        %v702 = vunpack.c.l.b16 %v608
        %v703 = vunpack.c.l.b16 %v609
        %v704 = vunpack.c.h.b16 %v609
        %v705 = vunpack.c.l.b16 %v610
        %v706 = vunpack.c.l.b16 %v611
        %v707 = vunpack.c.h.b16 %v611
        %v708 = vunpack.c.l.b16 %v612
        %v709 = vunpack.c.l.b16 %v613
        %v710 = vunpack.c.h.b16 %v613
        %v711 = vunpack.c.l.b16 %v614
        %v712 = vpack.c.b16 %v667, %v664
        %v713 = vpack.c.b16 %v668, %v665
        %v714 = vpack.c.b16 %v669, %v666
        %v715 = vpack.c.b16 %v673, %v670
        %v716 = vpack.c.b16 %v674, %v671
        %v717 = vpack.c.b16 %v675, %v672
        %v718 = vpack.c.b16 %v679, %v676
        %v719 = vpack.c.b16 %v680, %v677
        %v720 = vpack.c.b16 %v681, %v678
        %v721 = vpack.c.b16 %v685, %v682
        %v722 = vpack.c.b16 %v686, %v683
        %v723 = vpack.c.b16 %v687, %v684
        %v724 = vpack.c.b16 %v691, %v688
        %v725 = vpack.c.b16 %v692, %v689
        %v726 = vpack.c.b16 %v693, %v690
        %v727 = vpack.c.b16 %v697, %v694
        %v728 = vpack.c.b16 %v698, %v695
        %v729 = vpack.c.b16 %v699, %v696
        %v730 = vpack.c.b16 %v703, %v700
        %v731 = vpack.c.b16 %v704, %v701
        %v732 = vpack.c.b16 %v705, %v702
        %v733 = vpack.c.b16 %v709, %v706
        %v734 = vpack.c.b16 %v710, %v707
        %v735 = vpack.c.b16 %v711, %v708
        %760 = vmatprep.subr.bf16.mxu0 %v734
        %761 = vmatpush1.bf16.msra.mxu0 %v733
        %762 = vmatprep.subr.bf16.mxu0 %v731
        %763 = vmatpush1.bf16.msra.mxu0 %v730
        %764 = vmatprep.subr.bf16.mxu0 %v728
        %765 = vmatpush1.bf16.msra.mxu0 %v727
        %766 = vmatprep.subr.bf16.mxu0 %v725
        %767 = vmatpush1.bf16.msra.mxu0 %v724
        %768 = vmatprep.subr.bf16.mxu0 %v722
        %769 = vmatpush1.bf16.msra.mxu0 %v721
        %770 = vmatprep.subr.bf16.mxu0 %v719
        %771 = vmatpush1.bf16.msra.mxu0 %v718
        %772 = vmatprep.subr.bf16.mxu0 %v716
        %773 = vmatpush1.bf16.msra.mxu0 %v715
        %774 = vmatprep.subr.bf16.mxu0 %v713
        %775 = vmatpush1.bf16.msra.mxu0 %v712
        %776 = vmatprep.subr.bf16.mxu0 0
        %777 = vmatpush2.bf16.msra.mxu0 0
        %778 = vmatprep.subr.bf16.mxu0 0
        %779 = vmatpush2.bf16.msra.mxu0 0
        %780 = vmatprep.subr.bf16.mxu0 0
        %781 = vmatpush2.bf16.msra.mxu0 0
        %782 = vmatprep.subr.bf16.mxu0 0
        %783 = vmatpush2.bf16.msra.mxu0 0
        %784 = vmatprep.subr.bf16.mxu0 0
        %785 = vmatpush2.bf16.msra.mxu0 0
        %786 = vmatprep.subr.bf16.mxu0 0
        %787 = vmatpush2.bf16.msra.mxu0 0
        %788 = vmatprep.subr.bf16.mxu0 0
        %789 = vmatpush2.bf16.msra.mxu0 0
        %790 = vmatprep.subr.bf16.mxu0 0
        %791 = vmatpush2.bf16.msra.mxu0 0
        %792 = vmatprep.mubr.bf16.mxu0 0
        %793 = vmatmul.mubr.bf16.gmra.mxu0 %v582
        %v794 = vpop.f32.mrf.mxu0
        %v795 = vadd.f32 %v620, %v794
        %v796 = vpop.f32.mrf.mxu0
        %v797 = vadd.f32 %v624, %v796
        %v798 = vpop.f32.mrf.mxu0
        %v799 = vpop.f32.mrf.mxu0
        %800 = vdwg.mxu0
        %801 = vmatprep.subr.bf16.mxu0 0
        %802 = vmatpush1.bf16.msra.mxu0 %v735
        %803 = vmatprep.subr.bf16.mxu0 0
        %804 = vmatpush1.bf16.msra.mxu0 %v732
        %805 = vmatprep.subr.bf16.mxu0 0
        %806 = vmatpush1.bf16.msra.mxu0 %v729
        %807 = vmatprep.subr.bf16.mxu0 0
        %808 = vmatpush1.bf16.msra.mxu0 %v726
        %809 = vmatprep.subr.bf16.mxu0 0
        %810 = vmatpush1.bf16.msra.mxu0 %v723
        %811 = vmatprep.subr.bf16.mxu0 0
        %812 = vmatpush1.bf16.msra.mxu0 %v720
        %813 = vmatprep.subr.bf16.mxu0 0
        %814 = vmatpush1.bf16.msra.mxu0 %v717
        %815 = vmatprep.subr.bf16.mxu0 0
        %816 = vmatpush1.bf16.msra.mxu0 %v714
        %817 = vmatprep.subr.bf16.mxu0 0
        %818 = vmatpush2.bf16.msra.mxu0 0
        %819 = vmatprep.subr.bf16.mxu0 0
        %820 = vmatpush2.bf16.msra.mxu0 0
        %821 = vmatprep.subr.bf16.mxu0 0
        %822 = vmatpush2.bf16.msra.mxu0 0
        %823 = vmatprep.subr.bf16.mxu0 0
        %824 = vmatpush2.bf16.msra.mxu0 0
        %825 = vmatprep.subr.bf16.mxu0 0
        %826 = vmatpush2.bf16.msra.mxu0 0
        %827 = vmatprep.subr.bf16.mxu0 0
        %828 = vmatpush2.bf16.msra.mxu0 0
        %829 = vmatprep.subr.bf16.mxu0 0
        %830 = vmatpush2.bf16.msra.mxu0 0
        %831 = vmatprep.subr.bf16.mxu0 0
        %832 = vmatpush2.bf16.msra.mxu0 0
        %833 = vmatprep.mubr.bf16.mxu0 0
        %834 = vmatmul.mubr.bf16.gmra.mxu0 %v582
        %v835 = vpop.f32.mrf.mxu0
        %v836 = vadd.f32 %v628, %v835
        %v837 = vpop.f32.mrf.mxu0
        %v838 = vpop.f32.mrf.mxu0
        %v839 = vpop.f32.mrf.mxu0
        %840 = vdwg.mxu0
        %v841 = vpack.c.bf16 %v795, %v795
        %843 = vrot.lane.b32.xlu0 %v841, 96
        %v844 = vpop.permute.xlu0 %843
        %845 = vrot.lane.b32.xlu0 %v841, 64
        %v846 = vpop.permute.xlu0 %845
        %847 = vrot.lane.b32.xlu0 %v841, 32
        %v848 = vpop.permute.xlu0 %847
        %v850 = vunpack.c.l.s4 1983009808
        %v851 = vunpack.c.0.s8 %v850
        %v852 = vlaneseq
        %v853 = vshrl.u32 %v852, 7
        %v854 = vsub.s32 %v851, %v853
        %v855 = vrot.slane %v841, %v854
        %v858 = vunpack.c.l.s4 1983009808
        %v859 = vunpack.c.0.s8 %v858
        %v860 = vlaneseq
        %v861 = vshrl.u32 %v860, 7
        %v862 = vsub.s32 %v859, %v861
        %v863 = vrot.slane %v846, %v862
        %v864 = vcombine.low %v855, %v863
        %v865 = vcombine.high %v855, %v863
        %v867 = vunpack.c.l.s4 1934713408
        %v868 = vunpack.c.0.s8 %v867
        %v869 = vlaneseq
        %v870 = vshrl.u32 %v869, 7
        %v871 = vsub.s32 %v868, %v870
        %v872 = vrot.slane %v864, %v871
        %v874 = vunpack.c.l.s4 1934713408
        %v875 = vunpack.c.0.s8 %v874
        %v876 = vlaneseq
        %v877 = vshrl.u32 %v876, 7
        %v878 = vsub.s32 %v875, %v877
        %v879 = vrot.slane %v865, %v878
        %v880 = vcombine.high %v872, 0
        %v881 = vcombine.high %v879, 0
        %v884 = vunpack.c.l.s4 1983009808
        %v885 = vunpack.c.0.s8 %v884
        %v886 = vlaneseq
        %v887 = vshrl.u32 %v886, 7
        %v888 = vsub.s32 %v885, %v887
        %v889 = vrot.slane %v844, %v888
        %v892 = vunpack.c.l.s4 1983009808
        %v893 = vunpack.c.0.s8 %v892
        %v894 = vlaneseq
        %v895 = vshrl.u32 %v894, 7
        %v896 = vsub.s32 %v893, %v895
        %v897 = vrot.slane %v848, %v896
        %v898 = vcombine.low %v889, %v897
        %v899 = vcombine.high %v889, %v897
        %v901 = vunpack.c.l.s4 1934713408
        %v902 = vunpack.c.0.s8 %v901
        %v903 = vlaneseq
        %v904 = vshrl.u32 %v903, 7
        %v905 = vsub.s32 %v902, %v904
        %v906 = vrot.slane %v898, %v905
        %v908 = vunpack.c.l.s4 1934713408
        %v909 = vunpack.c.0.s8 %v908
        %v910 = vlaneseq
        %v911 = vshrl.u32 %v910, 7
        %v912 = vsub.s32 %v909, %v911
        %v913 = vrot.slane %v899, %v912
        %v914 = vcombine.high %v906, 0
        %v915 = vcombine.high %v913, 0
        %v918 = vpack.i.b16 %v906, %v872
        %v920 = vshrl.u32 %v872, 16
        %v921 = vshrl.u32 %v906, 16
        %v922 = vpack.i.b16 %v921, %v920
        %v926 = vpack.i.b16 %v914, %v880
        %v928 = vshrl.u32 %v880, 16
        %v929 = vshrl.u32 %v914, 16
        %v930 = vpack.i.b16 %v929, %v928
        %v934 = vpack.i.b16 %v913, %v879
        %v936 = vshrl.u32 %v879, 16
        %v937 = vshrl.u32 %v913, 16
        %v938 = vpack.i.b16 %v937, %v936
        %v942 = vpack.i.b16 %v915, %v881
        %v944 = vshrl.u32 %v881, 16
        %v945 = vshrl.u32 %v915, 16
        %v946 = vpack.i.b16 %v945, %v944
        %v948 = vcombine.low %v918, %v934
        %v950 = vunpack.c.l.s4 1983009808
        %v951 = vunpack.c.0.s8 %v950
        %v952 = vlaneseq
        %v953 = vshrl.u32 %v952, 7
        %v954 = vsub.s32 %v951, %v953
        %v955 = vrot.slane %v948, %v954
        %v956 = vcombine.low %v926, %v942
        %v958 = vunpack.c.l.s4 1983009808
        %v959 = vunpack.c.0.s8 %v958
        %v960 = vlaneseq
        %v961 = vshrl.u32 %v960, 7
        %v962 = vsub.s32 %v959, %v961
        %v963 = vrot.slane %v956, %v962
        %v964 = vcombine.low %v955, %v963
        %v966 = vunpack.c.l.s4 1934713408
        %v967 = vunpack.c.0.s8 %v966
        %v968 = vlaneseq
        %v969 = vshrl.u32 %v968, 7
        %v970 = vsub.s32 %v967, %v969
        %v971 = vrot.slane %v964, %v970
        %v972 = vcombine.high %v971, 0
        %v973 = vcombine.low %v922, %v938
        %v975 = vunpack.c.l.s4 1983009808
        %v976 = vunpack.c.0.s8 %v975
        %v977 = vlaneseq
        %v978 = vshrl.u32 %v977, 7
        %v979 = vsub.s32 %v976, %v978
        %v980 = vrot.slane %v973, %v979
        %v981 = vcombine.low %v930, %v946
        %v983 = vunpack.c.l.s4 1983009808
        %v984 = vunpack.c.0.s8 %v983
        %v985 = vlaneseq
        %v986 = vshrl.u32 %v985, 7
        %v987 = vsub.s32 %v984, %v986
        %v988 = vrot.slane %v981, %v987
        %v989 = vcombine.low %v980, %v988
        %v991 = vunpack.c.l.s4 1934713408
        %v992 = vunpack.c.0.s8 %v991
        %v993 = vlaneseq
        %v994 = vshrl.u32 %v993, 7
        %v995 = vsub.s32 %v992, %v994
        %v996 = vrot.slane %v989, %v995
        %v997 = vcombine.high %v996, 0
        %v1000 = vpack.i.b16 %v996, %v971
        %v1001 = vshrl.u32 %v971, 16
        %v1002 = vshrl.u32 %v996, 16
        %v1003 = vpack.i.b16 %v1002, %v1001
        %v1006 = vpack.i.b16 %v997, %v972
        %v1007 = vshrl.u32 %v972, 16
        %v1008 = vshrl.u32 %v997, 16
        %v1009 = vpack.i.b16 %v1008, %v1007
        %v1010 = vpack.c.bf16 %v797, %v797
        %1012 = vrot.lane.b32.xlu0 %v1010, 96
        %v1013 = vpop.permute.xlu0 %1012
        %1014 = vrot.lane.b32.xlu0 %v1010, 64
        %v1015 = vpop.permute.xlu0 %1014
        %1016 = vrot.lane.b32.xlu0 %v1010, 32
        %v1017 = vpop.permute.xlu0 %1016
        %v1019 = vunpack.c.l.s4 1983009808
        %v1020 = vunpack.c.0.s8 %v1019
        %v1021 = vlaneseq
        %v1022 = vshrl.u32 %v1021, 7
        %v1023 = vsub.s32 %v1020, %v1022
        %v1024 = vrot.slane %v1010, %v1023
        %v1027 = vunpack.c.l.s4 1983009808
        %v1028 = vunpack.c.0.s8 %v1027
        %v1029 = vlaneseq
        %v1030 = vshrl.u32 %v1029, 7
        %v1031 = vsub.s32 %v1028, %v1030
        %v1032 = vrot.slane %v1015, %v1031
        %v1033 = vcombine.low %v1024, %v1032
        %v1034 = vcombine.high %v1024, %v1032
        %v1036 = vunpack.c.l.s4 1934713408
        %v1037 = vunpack.c.0.s8 %v1036
        %v1038 = vlaneseq
        %v1039 = vshrl.u32 %v1038, 7
        %v1040 = vsub.s32 %v1037, %v1039
        %v1041 = vrot.slane %v1033, %v1040
        %v1043 = vunpack.c.l.s4 1934713408
        %v1044 = vunpack.c.0.s8 %v1043
        %v1045 = vlaneseq
        %v1046 = vshrl.u32 %v1045, 7
        %v1047 = vsub.s32 %v1044, %v1046
        %v1048 = vrot.slane %v1034, %v1047
        %v1049 = vcombine.high %v1041, 0
        %v1050 = vcombine.high %v1048, 0
        %v1053 = vunpack.c.l.s4 1983009808
        %v1054 = vunpack.c.0.s8 %v1053
        %v1055 = vlaneseq
        %v1056 = vshrl.u32 %v1055, 7
        %v1057 = vsub.s32 %v1054, %v1056
        %v1058 = vrot.slane %v1013, %v1057
        %v1061 = vunpack.c.l.s4 1983009808
        %v1062 = vunpack.c.0.s8 %v1061
        %v1063 = vlaneseq
        %v1064 = vshrl.u32 %v1063, 7
        %v1065 = vsub.s32 %v1062, %v1064
        %v1066 = vrot.slane %v1017, %v1065
        %v1067 = vcombine.low %v1058, %v1066
        %v1068 = vcombine.high %v1058, %v1066
        %v1070 = vunpack.c.l.s4 1934713408
        %v1071 = vunpack.c.0.s8 %v1070
        %v1072 = vlaneseq
        %v1073 = vshrl.u32 %v1072, 7
        %v1074 = vsub.s32 %v1071, %v1073
        %v1075 = vrot.slane %v1067, %v1074
        %v1077 = vunpack.c.l.s4 1934713408
        %v1078 = vunpack.c.0.s8 %v1077
        %v1079 = vlaneseq
        %v1080 = vshrl.u32 %v1079, 7
        %v1081 = vsub.s32 %v1078, %v1080
        %v1082 = vrot.slane %v1068, %v1081
        %v1083 = vcombine.high %v1075, 0
        %v1084 = vcombine.high %v1082, 0
        %v1087 = vpack.i.b16 %v1075, %v1041
        %v1089 = vshrl.u32 %v1041, 16
        %v1090 = vshrl.u32 %v1075, 16
        %v1091 = vpack.i.b16 %v1090, %v1089
        %v1095 = vpack.i.b16 %v1083, %v1049
        %v1097 = vshrl.u32 %v1049, 16
        %v1098 = vshrl.u32 %v1083, 16
        %v1099 = vpack.i.b16 %v1098, %v1097
        %v1103 = vpack.i.b16 %v1082, %v1048
        %v1105 = vshrl.u32 %v1048, 16
        %v1106 = vshrl.u32 %v1082, 16
        %v1107 = vpack.i.b16 %v1106, %v1105
        %v1111 = vpack.i.b16 %v1084, %v1050
        %v1113 = vshrl.u32 %v1050, 16
        %v1114 = vshrl.u32 %v1084, 16
        %v1115 = vpack.i.b16 %v1114, %v1113
        %v1117 = vcombine.low %v1087, %v1103
        %v1119 = vunpack.c.l.s4 1983009808
        %v1120 = vunpack.c.0.s8 %v1119
        %v1121 = vlaneseq
        %v1122 = vshrl.u32 %v1121, 7
        %v1123 = vsub.s32 %v1120, %v1122
        %v1124 = vrot.slane %v1117, %v1123
        %v1125 = vcombine.low %v1095, %v1111
        %v1127 = vunpack.c.l.s4 1983009808
        %v1128 = vunpack.c.0.s8 %v1127
        %v1129 = vlaneseq
        %v1130 = vshrl.u32 %v1129, 7
        %v1131 = vsub.s32 %v1128, %v1130
        %v1132 = vrot.slane %v1125, %v1131
        %v1133 = vcombine.low %v1124, %v1132
        %v1135 = vunpack.c.l.s4 1934713408
        %v1136 = vunpack.c.0.s8 %v1135
        %v1137 = vlaneseq
        %v1138 = vshrl.u32 %v1137, 7
        %v1139 = vsub.s32 %v1136, %v1138
        %v1140 = vrot.slane %v1133, %v1139
        %v1141 = vcombine.high %v1140, 0
        %v1142 = vcombine.low %v1091, %v1107
        %v1144 = vunpack.c.l.s4 1983009808
        %v1145 = vunpack.c.0.s8 %v1144
        %v1146 = vlaneseq
        %v1147 = vshrl.u32 %v1146, 7
        %v1148 = vsub.s32 %v1145, %v1147
        %v1149 = vrot.slane %v1142, %v1148
        %v1150 = vcombine.low %v1099, %v1115
        %v1152 = vunpack.c.l.s4 1983009808
        %v1153 = vunpack.c.0.s8 %v1152
        %v1154 = vlaneseq
        %v1155 = vshrl.u32 %v1154, 7
        %v1156 = vsub.s32 %v1153, %v1155
        %v1157 = vrot.slane %v1150, %v1156
        %v1158 = vcombine.low %v1149, %v1157
        %v1160 = vunpack.c.l.s4 1934713408
        %v1161 = vunpack.c.0.s8 %v1160
        %v1162 = vlaneseq
        %v1163 = vshrl.u32 %v1162, 7
        %v1164 = vsub.s32 %v1161, %v1163
        %v1165 = vrot.slane %v1158, %v1164
        %v1166 = vcombine.high %v1165, 0
        %v1169 = vpack.i.b16 %v1165, %v1140
        %v1170 = vshrl.u32 %v1140, 16
        %v1171 = vshrl.u32 %v1165, 16
        %v1172 = vpack.i.b16 %v1171, %v1170
        %v1175 = vpack.i.b16 %v1166, %v1141
        %v1176 = vshrl.u32 %v1141, 16
        %v1177 = vshrl.u32 %v1166, 16
        %v1178 = vpack.i.b16 %v1177, %v1176
        %v1179 = vpack.c.bf16 %v836, %v836
        %1181 = vrot.lane.b32.xlu0 %v1179, 96
        %v1182 = vpop.permute.xlu0 %1181
        %1183 = vrot.lane.b32.xlu0 %v1179, 64
        %v1184 = vpop.permute.xlu0 %1183
        %1185 = vrot.lane.b32.xlu0 %v1179, 32
        %v1186 = vpop.permute.xlu0 %1185
        %v1188 = vunpack.c.l.s4 1983009808
        %v1189 = vunpack.c.0.s8 %v1188
        %v1190 = vlaneseq
        %v1191 = vshrl.u32 %v1190, 7
        %v1192 = vsub.s32 %v1189, %v1191
        %v1193 = vrot.slane %v1179, %v1192
        %v1196 = vunpack.c.l.s4 1983009808
        %v1197 = vunpack.c.0.s8 %v1196
        %v1198 = vlaneseq
        %v1199 = vshrl.u32 %v1198, 7
        %v1200 = vsub.s32 %v1197, %v1199
        %v1201 = vrot.slane %v1184, %v1200
        %v1202 = vcombine.low %v1193, %v1201
        %v1203 = vcombine.high %v1193, %v1201
        %v1205 = vunpack.c.l.s4 1934713408
        %v1206 = vunpack.c.0.s8 %v1205
        %v1207 = vlaneseq
        %v1208 = vshrl.u32 %v1207, 7
        %v1209 = vsub.s32 %v1206, %v1208
        %v1210 = vrot.slane %v1202, %v1209
        %v1212 = vunpack.c.l.s4 1934713408
        %v1213 = vunpack.c.0.s8 %v1212
        %v1214 = vlaneseq
        %v1215 = vshrl.u32 %v1214, 7
        %v1216 = vsub.s32 %v1213, %v1215
        %v1217 = vrot.slane %v1203, %v1216
        %v1218 = vcombine.high %v1210, 0
        %v1219 = vcombine.high %v1217, 0
        %v1222 = vunpack.c.l.s4 1983009808
        %v1223 = vunpack.c.0.s8 %v1222
        %v1224 = vlaneseq
        %v1225 = vshrl.u32 %v1224, 7
        %v1226 = vsub.s32 %v1223, %v1225
        %v1227 = vrot.slane %v1182, %v1226
        %v1230 = vunpack.c.l.s4 1983009808
        %v1231 = vunpack.c.0.s8 %v1230
        %v1232 = vlaneseq
        %v1233 = vshrl.u32 %v1232, 7
        %v1234 = vsub.s32 %v1231, %v1233
        %v1235 = vrot.slane %v1186, %v1234
        %v1236 = vcombine.low %v1227, %v1235
        %v1237 = vcombine.high %v1227, %v1235
        %v1239 = vunpack.c.l.s4 1934713408
        %v1240 = vunpack.c.0.s8 %v1239
        %v1241 = vlaneseq
        %v1242 = vshrl.u32 %v1241, 7
        %v1243 = vsub.s32 %v1240, %v1242
        %v1244 = vrot.slane %v1236, %v1243
        %v1246 = vunpack.c.l.s4 1934713408
        %v1247 = vunpack.c.0.s8 %v1246
        %v1248 = vlaneseq
        %v1249 = vshrl.u32 %v1248, 7
        %v1250 = vsub.s32 %v1247, %v1249
        %v1251 = vrot.slane %v1237, %v1250
        %v1252 = vcombine.high %v1244, 0
        %v1253 = vcombine.high %v1251, 0
        %v1256 = vpack.i.b16 %v1244, %v1210
        %v1258 = vshrl.u32 %v1210, 16
        %v1259 = vshrl.u32 %v1244, 16
        %v1260 = vpack.i.b16 %v1259, %v1258
        %v1264 = vpack.i.b16 %v1252, %v1218
        %v1266 = vshrl.u32 %v1218, 16
        %v1267 = vshrl.u32 %v1252, 16
        %v1268 = vpack.i.b16 %v1267, %v1266
        %v1272 = vpack.i.b16 %v1251, %v1217
        %v1274 = vshrl.u32 %v1217, 16
        %v1275 = vshrl.u32 %v1251, 16
        %v1276 = vpack.i.b16 %v1275, %v1274
        %v1280 = vpack.i.b16 %v1253, %v1219
        %v1282 = vshrl.u32 %v1219, 16
        %v1283 = vshrl.u32 %v1253, 16
        %v1284 = vpack.i.b16 %v1283, %v1282
        %v1286 = vcombine.low %v1256, %v1272
        %v1288 = vunpack.c.l.s4 1983009808
        %v1289 = vunpack.c.0.s8 %v1288
        %v1290 = vlaneseq
        %v1291 = vshrl.u32 %v1290, 7
        %v1292 = vsub.s32 %v1289, %v1291
        %v1293 = vrot.slane %v1286, %v1292
        %v1294 = vcombine.low %v1264, %v1280
        %v1296 = vunpack.c.l.s4 1983009808
        %v1297 = vunpack.c.0.s8 %v1296
        %v1298 = vlaneseq
        %v1299 = vshrl.u32 %v1298, 7
        %v1300 = vsub.s32 %v1297, %v1299
        %v1301 = vrot.slane %v1294, %v1300
        %v1302 = vcombine.low %v1293, %v1301
        %v1304 = vunpack.c.l.s4 1934713408
        %v1305 = vunpack.c.0.s8 %v1304
        %v1306 = vlaneseq
        %v1307 = vshrl.u32 %v1306, 7
        %v1308 = vsub.s32 %v1305, %v1307
        %v1309 = vrot.slane %v1302, %v1308
        %v1310 = vcombine.high %v1309, 0
        %v1311 = vcombine.low %v1260, %v1276
        %v1313 = vunpack.c.l.s4 1983009808
        %v1314 = vunpack.c.0.s8 %v1313
        %v1315 = vlaneseq
        %v1316 = vshrl.u32 %v1315, 7
        %v1317 = vsub.s32 %v1314, %v1316
        %v1318 = vrot.slane %v1311, %v1317
        %v1319 = vcombine.low %v1268, %v1284
        %v1321 = vunpack.c.l.s4 1983009808
        %v1322 = vunpack.c.0.s8 %v1321
        %v1323 = vlaneseq
        %v1324 = vshrl.u32 %v1323, 7
        %v1325 = vsub.s32 %v1322, %v1324
        %v1326 = vrot.slane %v1319, %v1325
        %v1327 = vcombine.low %v1318, %v1326
        %v1329 = vunpack.c.l.s4 1934713408
        %v1330 = vunpack.c.0.s8 %v1329
        %v1331 = vlaneseq
        %v1332 = vshrl.u32 %v1331, 7
        %v1333 = vsub.s32 %v1330, %v1332
        %v1334 = vrot.slane %v1327, %v1333
        %v1335 = vcombine.high %v1334, 0
        %v1338 = vpack.i.b16 %v1334, %v1309
        %v1339 = vshrl.u32 %v1309, 16
        %v1340 = vshrl.u32 %v1334, 16
        %v1341 = vpack.i.b16 %v1340, %v1339
        %v1344 = vpack.i.b16 %v1335, %v1310
        %v1345 = vshrl.u32 %v1310, 16
        %v1346 = vshrl.u32 %v1335, 16
        %v1347 = vpack.i.b16 %v1346, %v1345
        %vm1348 = vcmask 261120
        %v1350 = vsel %vm1348, %v1000, 0
        %v1353 = vsel %vm1348, %v1169, 0
        %1355 = vmatprep.subr.bf16.mxu0 0
        %1356 = vmatpush1.bf16.xpose.msra.mxu0 0
        %1357 = vmatprep.subr.bf16.mxu0 0
        %1358 = vmatpush1.bf16.xpose.msra.mxu0 0
        %1359 = vmatprep.subr.bf16.mxu0 0
        %1360 = vmatpush1.bf16.xpose.msra.mxu0 0
        %1361 = vmatprep.subr.bf16.mxu0 0
        %1362 = vmatpush1.bf16.xpose.msra.mxu0 0
        %1363 = vmatprep.subr.bf16.mxu0 0
        %1364 = vmatpush1.bf16.xpose.msra.mxu0 0
        %1365 = vmatprep.subr.bf16.mxu0 0
        %1366 = vmatpush1.bf16.xpose.msra.mxu0 0
        %1367 = vmatprep.subr.bf16.mxu0 0
        %1368 = vmatpush1.bf16.xpose.msra.mxu0 0
        %1369 = vmatprep.subr.bf16.mxu0 0
        %1370 = vmatpush1.bf16.xpose.msra.mxu0 %v1353
        %1371 = vmatprep.subr.bf16.mxu0 0
        %1372 = vmatpush2.bf16.xpose.msra.mxu0 0
        %1373 = vmatprep.subr.bf16.mxu0 0
        %1374 = vmatpush2.bf16.xpose.msra.mxu0 0
        %1375 = vmatprep.subr.bf16.mxu0 0
        %1376 = vmatpush2.bf16.xpose.msra.mxu0 0
        %1377 = vmatprep.subr.bf16.mxu0 0
        %1378 = vmatpush2.bf16.xpose.msra.mxu0 0
        %1379 = vmatprep.subr.bf16.mxu0 0
        %1380 = vmatpush2.bf16.xpose.msra.mxu0 0
        %1381 = vmatprep.subr.bf16.mxu0 0
        %1382 = vmatpush2.bf16.xpose.msra.mxu0 0
        %1383 = vmatprep.subr.bf16.mxu0 0
        %1384 = vmatpush2.bf16.xpose.msra.mxu0 0
        %1385 = vmatprep.subr.bf16.mxu0 0
        %1386 = vmatpush2.bf16.xpose.msra.mxu0 0
        %1387 = vmatprep.mubr.bf16.mxu0 0
        %1388 = vmatmul.mubr.bf16.gmra.mxu0 %v1350
        %v1389 = vpop.f32.mrf.mxu0
        %v1390 = vadd.f32 0.0, %v1389
        %v1391 = vpop.f32.mrf.mxu0
        %v1392 = vpop.f32.mrf.mxu0
        %v1393 = vpop.f32.mrf.mxu0
        %1394 = vdwg.mxu0
        %v1396 = vsel %vm1348, %v1003, 0
        %v1399 = vsel %vm1348, %v1172, 0
        %1401 = vmatprep.subr.bf16.mxu0 0
        %1402 = vmatpush1.bf16.xpose.msra.mxu0 0
        %1403 = vmatprep.subr.bf16.mxu0 0
        %1404 = vmatpush1.bf16.xpose.msra.mxu0 0
        %1405 = vmatprep.subr.bf16.mxu0 0
        %1406 = vmatpush1.bf16.xpose.msra.mxu0 0
        %1407 = vmatprep.subr.bf16.mxu0 0
        %1408 = vmatpush1.bf16.xpose.msra.mxu0 0
        %1409 = vmatprep.subr.bf16.mxu0 0
        %1410 = vmatpush1.bf16.xpose.msra.mxu0 0
        %1411 = vmatprep.subr.bf16.mxu0 0
        %1412 = vmatpush1.bf16.xpose.msra.mxu0 0
        %1413 = vmatprep.subr.bf16.mxu0 0
        %1414 = vmatpush1.bf16.xpose.msra.mxu0 0
        %1415 = vmatprep.subr.bf16.mxu0 0
        %1416 = vmatpush1.bf16.xpose.msra.mxu0 %v1399
        %1417 = vmatprep.subr.bf16.mxu0 0
        %1418 = vmatpush2.bf16.xpose.msra.mxu0 0
        %1419 = vmatprep.subr.bf16.mxu0 0
        %1420 = vmatpush2.bf16.xpose.msra.mxu0 0
        %1421 = vmatprep.subr.bf16.mxu0 0
        %1422 = vmatpush2.bf16.xpose.msra.mxu0 0
        %1423 = vmatprep.subr.bf16.mxu0 0
        %1424 = vmatpush2.bf16.xpose.msra.mxu0 0
        %1425 = vmatprep.subr.bf16.mxu0 0
        %1426 = vmatpush2.bf16.xpose.msra.mxu0 0
        %1427 = vmatprep.subr.bf16.mxu0 0
        %1428 = vmatpush2.bf16.xpose.msra.mxu0 0
        %1429 = vmatprep.subr.bf16.mxu0 0
        %1430 = vmatpush2.bf16.xpose.msra.mxu0 0
        %1431 = vmatprep.subr.bf16.mxu0 0
        %1432 = vmatpush2.bf16.xpose.msra.mxu0 0
        %1433 = vmatprep.mubr.bf16.mxu0 0
        %1434 = vmatmul.mubr.bf16.gmra.mxu0 %v1396
        %v1435 = vpop.f32.mrf.mxu0
        %v1436 = vadd.f32 0.0, %v1435
        %v1437 = vpop.f32.mrf.mxu0
        %v1438 = vpop.f32.mrf.mxu0
        %v1439 = vpop.f32.mrf.mxu0
        %1440 = vdwg.mxu0
        %v1442 = vsel %vm1348, %v1006, 0
        %v1445 = vsel %vm1348, %v1175, 0
        %1447 = vmatprep.subr.bf16.mxu0 0
        %1448 = vmatpush1.bf16.xpose.msra.mxu0 0
        %1449 = vmatprep.subr.bf16.mxu0 0
        %1450 = vmatpush1.bf16.xpose.msra.mxu0 0
        %1451 = vmatprep.subr.bf16.mxu0 0
        %1452 = vmatpush1.bf16.xpose.msra.mxu0 0
        %1453 = vmatprep.subr.bf16.mxu0 0
        %1454 = vmatpush1.bf16.xpose.msra.mxu0 0
        %1455 = vmatprep.subr.bf16.mxu0 0
        %1456 = vmatpush1.bf16.xpose.msra.mxu0 0
        %1457 = vmatprep.subr.bf16.mxu0 0
        %1458 = vmatpush1.bf16.xpose.msra.mxu0 0
        %1459 = vmatprep.subr.bf16.mxu0 0
        %1460 = vmatpush1.bf16.xpose.msra.mxu0 0
        %1461 = vmatprep.subr.bf16.mxu0 0
        %1462 = vmatpush1.bf16.xpose.msra.mxu0 %v1445
        %1463 = vmatprep.subr.bf16.mxu0 0
        %1464 = vmatpush2.bf16.xpose.msra.mxu0 0
        %1465 = vmatprep.subr.bf16.mxu0 0
        %1466 = vmatpush2.bf16.xpose.msra.mxu0 0
        %1467 = vmatprep.subr.bf16.mxu0 0
        %1468 = vmatpush2.bf16.xpose.msra.mxu0 0
        %1469 = vmatprep.subr.bf16.mxu0 0
        %1470 = vmatpush2.bf16.xpose.msra.mxu0 0
        %1471 = vmatprep.subr.bf16.mxu0 0
        %1472 = vmatpush2.bf16.xpose.msra.mxu0 0
        %1473 = vmatprep.subr.bf16.mxu0 0
        %1474 = vmatpush2.bf16.xpose.msra.mxu0 0
        %1475 = vmatprep.subr.bf16.mxu0 0
        %1476 = vmatpush2.bf16.xpose.msra.mxu0 0
        %1477 = vmatprep.subr.bf16.mxu0 0
        %1478 = vmatpush2.bf16.xpose.msra.mxu0 0
        %1479 = vmatprep.mubr.bf16.mxu0 0
        %1480 = vmatmul.mubr.bf16.gmra.mxu0 %v1442
        %v1481 = vpop.f32.mrf.mxu0
        %v1482 = vadd.f32 0.0, %v1481
        %v1483 = vpop.f32.mrf.mxu0
        %v1484 = vpop.f32.mrf.mxu0
        %v1485 = vpop.f32.mrf.mxu0
        %1486 = vdwg.mxu0
        %v1488 = vsel %vm1348, %v1009, 0
        %v1491 = vsel %vm1348, %v1178, 0
        %1493 = vmatprep.subr.bf16.mxu0 0
        %1494 = vmatpush1.bf16.xpose.msra.mxu0 0
        %1495 = vmatprep.subr.bf16.mxu0 0
        %1496 = vmatpush1.bf16.xpose.msra.mxu0 0
        %1497 = vmatprep.subr.bf16.mxu0 0
        %1498 = vmatpush1.bf16.xpose.msra.mxu0 0
        %1499 = vmatprep.subr.bf16.mxu0 0
        %1500 = vmatpush1.bf16.xpose.msra.mxu0 0
        %1501 = vmatprep.subr.bf16.mxu0 0
        %1502 = vmatpush1.bf16.xpose.msra.mxu0 0
        %1503 = vmatprep.subr.bf16.mxu0 0
        %1504 = vmatpush1.bf16.xpose.msra.mxu0 0
        %1505 = vmatprep.subr.bf16.mxu0 0
        %1506 = vmatpush1.bf16.xpose.msra.mxu0 0
        %1507 = vmatprep.subr.bf16.mxu0 0
        %1508 = vmatpush1.bf16.xpose.msra.mxu0 %v1491
        %1509 = vmatprep.subr.bf16.mxu0 0
        %1510 = vmatpush2.bf16.xpose.msra.mxu0 0
        %1511 = vmatprep.subr.bf16.mxu0 0
        %1512 = vmatpush2.bf16.xpose.msra.mxu0 0
        %1513 = vmatprep.subr.bf16.mxu0 0
        %1514 = vmatpush2.bf16.xpose.msra.mxu0 0
        %1515 = vmatprep.subr.bf16.mxu0 0
        %1516 = vmatpush2.bf16.xpose.msra.mxu0 0
        %1517 = vmatprep.subr.bf16.mxu0 0
        %1518 = vmatpush2.bf16.xpose.msra.mxu0 0
        %1519 = vmatprep.subr.bf16.mxu0 0
        %1520 = vmatpush2.bf16.xpose.msra.mxu0 0
        %1521 = vmatprep.subr.bf16.mxu0 0
        %1522 = vmatpush2.bf16.xpose.msra.mxu0 0
        %1523 = vmatprep.subr.bf16.mxu0 0
        %1524 = vmatpush2.bf16.xpose.msra.mxu0 0
        %1525 = vmatprep.mubr.bf16.mxu0 0
        %1526 = vmatmul.mubr.bf16.gmra.mxu0 %v1488
        %v1527 = vpop.f32.mrf.mxu0
        %v1528 = vadd.f32 0.0, %v1527
        %v1529 = vpop.f32.mrf.mxu0
        %v1530 = vpop.f32.mrf.mxu0
        %v1531 = vpop.f32.mrf.mxu0
        %1532 = vdwg.mxu0
        %v1533 = vlaneseq
        %v1534 = vshrl.u32 %v1533, 7
        %v1535 = vlaneseq
        %v1536 = vand.u32 %v1535, 127
        %vm1537 = vcmp.ge.s32.totalorder %v1534, %v1536
        %v1538 = vsel %vm1537, 1, 0
        %vm1539 = vcmp.eq.s32.totalorder %v1538, 1
        %v1540 = vsel %vm1539, %v1390, -10000.0
        %v1541 = vsel %vm1539, %v1436, -10000.0
        %v1542 = vsel %vm1539, %v1482, -10000.0
        %v1543 = vsel %vm1539, %v1528, -10000.0
        %vm1544 = vcmask 64512
        %v1545 = vsel %vm1544, %v1540, -inf
        %1546 = vmax.xlane.f32.xlu0 %v1545
        %v1547 = vpop.xlane.xlu0 %1546
        %v1548 = vsel %vm1544, %v1541, -inf
        %1549 = vmax.xlane.f32.xlu0 %v1548
        %v1550 = vpop.xlane.xlu0 %1549
        %v1551 = vsel %vm1544, %v1542, -inf
        %1552 = vmax.xlane.f32.xlu0 %v1551
        %v1553 = vpop.xlane.xlu0 %1552
        %v1554 = vsel %vm1544, %v1543, -inf
        %1555 = vmax.xlane.f32.xlu0 %v1554
        %v1556 = vpop.xlane.xlu0 %1555
        %v1557 = vsub.f32 %v1540, %v1547
        %v1558 = vsub.f32 %v1541, %v1550
        %v1559 = vsub.f32 %v1542, %v1553
        %v1560 = vsub.f32 %v1543, %v1556
        %v1561 = vmul.f32 %v1557, 1.442695
        %v1562 = vpow.pop %v1561
        %v1563 = vmul.f32 %v1558, 1.442695
        %v1564 = vpow.pop %v1563
        %v1565 = vmul.f32 %v1559, 1.442695
        %v1566 = vpow.pop %v1565
        %v1567 = vmul.f32 %v1560, 1.442695
        %v1568 = vpow.pop %v1567
        %v1569 = vsel %vm1544, %v1562, 0.0
        %1570 = vadd.xlane.f32.xlu0 %v1569
        %v1571 = vpop.xlane.xlu0 %1570
        %v1572 = vsel %vm1544, %v1564, 0.0
        %1573 = vadd.xlane.f32.xlu0 %v1572
        %v1574 = vpop.xlane.xlu0 %1573
        %v1575 = vsel %vm1544, %v1566, 0.0
        %1576 = vadd.xlane.f32.xlu0 %v1575
        %v1577 = vpop.xlane.xlu0 %1576
        %v1578 = vsel %vm1544, %v1568, 0.0
        %1579 = vadd.xlane.f32.xlu0 %v1578
        %v1580 = vpop.xlane.xlu0 %1579
        %v1581 = vrcp.pop %v1571
        %v1582 = vrcp.pop %v1574
        %v1583 = vrcp.pop %v1577
        %v1584 = vrcp.pop %v1580
        %v1585 = vmul.f32 %v1562, %v1581
        %v1586 = vmul.f32 %v1564, %v1582
        %v1587 = vmul.f32 %v1566, %v1583
        %v1588 = vmul.f32 %v1568, %v1584
        %v1589 = vpack.c.bf16 %v1585, %v1585
        %v1590 = vpack.c.bf16 %v1586, %v1586
        %v1591 = vpack.c.bf16 %v1587, %v1587
        %v1592 = vpack.c.bf16 %v1588, %v1588
        %v1594 = vsel %vm1544, %v1589, 0
        %vm1596 = vcmask 1043456
        %v1598 = vsel %vm1596, %v1338, 0
        %1600 = vmatprep.subr.bf16.mxu0 0
        %1601 = vmatpush1.bf16.msra.mxu0 0
        %1602 = vmatprep.subr.bf16.mxu0 0
        %1603 = vmatpush1.bf16.msra.mxu0 0
        %1604 = vmatprep.subr.bf16.mxu0 0
        %1605 = vmatpush1.bf16.msra.mxu0 0
        %1606 = vmatprep.subr.bf16.mxu0 0
        %1607 = vmatpush1.bf16.msra.mxu0 0
        %1608 = vmatprep.subr.bf16.mxu0 0
        %1609 = vmatpush1.bf16.msra.mxu0 0
        %1610 = vmatprep.subr.bf16.mxu0 0
        %1611 = vmatpush1.bf16.msra.mxu0 0
        %1612 = vmatprep.subr.bf16.mxu0 0
        %1613 = vmatpush1.bf16.msra.mxu0 0
        %1614 = vmatprep.subr.bf16.mxu0 0
        %1615 = vmatpush1.bf16.msra.mxu0 %v1598
        %1616 = vmatprep.subr.bf16.mxu0 0
        %1617 = vmatpush2.bf16.msra.mxu0 0
        %1618 = vmatprep.subr.bf16.mxu0 0
        %1619 = vmatpush2.bf16.msra.mxu0 0
        %1620 = vmatprep.subr.bf16.mxu0 0
        %1621 = vmatpush2.bf16.msra.mxu0 0
        %1622 = vmatprep.subr.bf16.mxu0 0
        %1623 = vmatpush2.bf16.msra.mxu0 0
        %1624 = vmatprep.subr.bf16.mxu0 0
        %1625 = vmatpush2.bf16.msra.mxu0 0
        %1626 = vmatprep.subr.bf16.mxu0 0
        %1627 = vmatpush2.bf16.msra.mxu0 0
        %1628 = vmatprep.subr.bf16.mxu0 0
        %1629 = vmatpush2.bf16.msra.mxu0 0
        %1630 = vmatprep.subr.bf16.mxu0 0
        %1631 = vmatpush2.bf16.msra.mxu0 0
        %1632 = vmatprep.mubr.bf16.mxu0 0
        %1633 = vmatmul.mubr.bf16.gmra.mxu0 %v1594
        %v1634 = vpop.f32.mrf.mxu0
        %v1635 = vadd.f32 0.0, %v1634
        %v1636 = vpop.f32.mrf.mxu0
        %v1637 = vpop.f32.mrf.mxu0
        %v1638 = vpop.f32.mrf.mxu0
        %1639 = vdwg.mxu0
        %v1641 = vsel %vm1544, %v1590, 0
        %v1644 = vsel %vm1596, %v1341, 0
        %1646 = vmatprep.subr.bf16.mxu0 0
        %1647 = vmatpush1.bf16.msra.mxu0 0
        %1648 = vmatprep.subr.bf16.mxu0 0
        %1649 = vmatpush1.bf16.msra.mxu0 0
        %1650 = vmatprep.subr.bf16.mxu0 0
        %1651 = vmatpush1.bf16.msra.mxu0 0
        %1652 = vmatprep.subr.bf16.mxu0 0
        %1653 = vmatpush1.bf16.msra.mxu0 0
        %1654 = vmatprep.subr.bf16.mxu0 0
        %1655 = vmatpush1.bf16.msra.mxu0 0
        %1656 = vmatprep.subr.bf16.mxu0 0
        %1657 = vmatpush1.bf16.msra.mxu0 0
        %1658 = vmatprep.subr.bf16.mxu0 0
        %1659 = vmatpush1.bf16.msra.mxu0 0
        %1660 = vmatprep.subr.bf16.mxu0 0
        %1661 = vmatpush1.bf16.msra.mxu0 %v1644
        %1662 = vmatprep.subr.bf16.mxu0 0
        %1663 = vmatpush2.bf16.msra.mxu0 0
        %1664 = vmatprep.subr.bf16.mxu0 0
        %1665 = vmatpush2.bf16.msra.mxu0 0
        %1666 = vmatprep.subr.bf16.mxu0 0
        %1667 = vmatpush2.bf16.msra.mxu0 0
        %1668 = vmatprep.subr.bf16.mxu0 0
        %1669 = vmatpush2.bf16.msra.mxu0 0
        %1670 = vmatprep.subr.bf16.mxu0 0
        %1671 = vmatpush2.bf16.msra.mxu0 0
        %1672 = vmatprep.subr.bf16.mxu0 0
        %1673 = vmatpush2.bf16.msra.mxu0 0
        %1674 = vmatprep.subr.bf16.mxu0 0
        %1675 = vmatpush2.bf16.msra.mxu0 0
        %1676 = vmatprep.subr.bf16.mxu0 0
        %1677 = vmatpush2.bf16.msra.mxu0 0
        %1678 = vmatprep.mubr.bf16.mxu0 0
        %1679 = vmatmul.mubr.bf16.gmra.mxu0 %v1641
        %v1680 = vpop.f32.mrf.mxu0
        %v1681 = vadd.f32 0.0, %v1680
        %v1682 = vpop.f32.mrf.mxu0
        %v1683 = vpop.f32.mrf.mxu0
        %v1684 = vpop.f32.mrf.mxu0
        %1685 = vdwg.mxu0
        %v1687 = vsel %vm1544, %v1591, 0
        %v1690 = vsel %vm1596, %v1344, 0
        %1692 = vmatprep.subr.bf16.mxu0 0
        %1693 = vmatpush1.bf16.msra.mxu0 0
        %1694 = vmatprep.subr.bf16.mxu0 0
        %1695 = vmatpush1.bf16.msra.mxu0 0
        %1696 = vmatprep.subr.bf16.mxu0 0
        %1697 = vmatpush1.bf16.msra.mxu0 0
        %1698 = vmatprep.subr.bf16.mxu0 0
        %1699 = vmatpush1.bf16.msra.mxu0 0
        %1700 = vmatprep.subr.bf16.mxu0 0
        %1701 = vmatpush1.bf16.msra.mxu0 0
        %1702 = vmatprep.subr.bf16.mxu0 0
        %1703 = vmatpush1.bf16.msra.mxu0 0
        %1704 = vmatprep.subr.bf16.mxu0 0
        %1705 = vmatpush1.bf16.msra.mxu0 0
        %1706 = vmatprep.subr.bf16.mxu0 0
        %1707 = vmatpush1.bf16.msra.mxu0 %v1690
        %1708 = vmatprep.subr.bf16.mxu0 0
        %1709 = vmatpush2.bf16.msra.mxu0 0
        %1710 = vmatprep.subr.bf16.mxu0 0
        %1711 = vmatpush2.bf16.msra.mxu0 0
        %1712 = vmatprep.subr.bf16.mxu0 0
        %1713 = vmatpush2.bf16.msra.mxu0 0
        %1714 = vmatprep.subr.bf16.mxu0 0
        %1715 = vmatpush2.bf16.msra.mxu0 0
        %1716 = vmatprep.subr.bf16.mxu0 0
        %1717 = vmatpush2.bf16.msra.mxu0 0
        %1718 = vmatprep.subr.bf16.mxu0 0
        %1719 = vmatpush2.bf16.msra.mxu0 0
        %1720 = vmatprep.subr.bf16.mxu0 0
        %1721 = vmatpush2.bf16.msra.mxu0 0
        %1722 = vmatprep.subr.bf16.mxu0 0
        %1723 = vmatpush2.bf16.msra.mxu0 0
        %1724 = vmatprep.mubr.bf16.mxu0 0
        %1725 = vmatmul.mubr.bf16.gmra.mxu0 %v1687
        %v1726 = vpop.f32.mrf.mxu0
        %v1727 = vadd.f32 0.0, %v1726
        %v1728 = vpop.f32.mrf.mxu0
        %v1729 = vpop.f32.mrf.mxu0
        %v1730 = vpop.f32.mrf.mxu0
        %1731 = vdwg.mxu0
        %v1733 = vsel %vm1544, %v1592, 0
        %v1736 = vsel %vm1596, %v1347, 0
        %1738 = vmatprep.subr.bf16.mxu0 0
        %1739 = vmatpush1.bf16.msra.mxu0 0
        %1740 = vmatprep.subr.bf16.mxu0 0
        %1741 = vmatpush1.bf16.msra.mxu0 0
        %1742 = vmatprep.subr.bf16.mxu0 0
        %1743 = vmatpush1.bf16.msra.mxu0 0
        %1744 = vmatprep.subr.bf16.mxu0 0
        %1745 = vmatpush1.bf16.msra.mxu0 0
        %1746 = vmatprep.subr.bf16.mxu0 0
        %1747 = vmatpush1.bf16.msra.mxu0 0
        %1748 = vmatprep.subr.bf16.mxu0 0
        %1749 = vmatpush1.bf16.msra.mxu0 0
        %1750 = vmatprep.subr.bf16.mxu0 0
        %1751 = vmatpush1.bf16.msra.mxu0 0
        %1752 = vmatprep.subr.bf16.mxu0 0
        %1753 = vmatpush1.bf16.msra.mxu0 %v1736
        %1754 = vmatprep.subr.bf16.mxu0 0
        %1755 = vmatpush2.bf16.msra.mxu0 0
        %1756 = vmatprep.subr.bf16.mxu0 0
        %1757 = vmatpush2.bf16.msra.mxu0 0
        %1758 = vmatprep.subr.bf16.mxu0 0
        %1759 = vmatpush2.bf16.msra.mxu0 0
        %1760 = vmatprep.subr.bf16.mxu0 0
        %1761 = vmatpush2.bf16.msra.mxu0 0
        %1762 = vmatprep.subr.bf16.mxu0 0
        %1763 = vmatpush2.bf16.msra.mxu0 0
        %1764 = vmatprep.subr.bf16.mxu0 0
        %1765 = vmatpush2.bf16.msra.mxu0 0
        %1766 = vmatprep.subr.bf16.mxu0 0
        %1767 = vmatpush2.bf16.msra.mxu0 0
        %1768 = vmatprep.subr.bf16.mxu0 0
        %1769 = vmatpush2.bf16.msra.mxu0 0
        %1770 = vmatprep.mubr.bf16.mxu0 0
        %1771 = vmatmul.mubr.bf16.gmra.mxu0 %v1733
        %v1772 = vpop.f32.mrf.mxu0
        %v1773 = vadd.f32 0.0, %v1772
        %v1774 = vpop.f32.mrf.mxu0
        %v1775 = vpop.f32.mrf.mxu0
        %v1776 = vpop.f32.mrf.mxu0
        %1777 = vdwg.mxu0
        %v1778 = vcombine.low %v1635, %v1727
        %v1779 = vcombine.high %v1635, %v1727
        %v1781 = vunpack.c.l.s4 1983009808
        %v1782 = vunpack.c.0.s8 %v1781
        %v1783 = vlaneseq
        %v1784 = vshrl.u32 %v1783, 7
        %v1785 = vsub.s32 %v1782, %v1784
        %v1786 = vrot.slane %v1778, %v1785
        %v1788 = vunpack.c.l.s4 1983009808
        %v1789 = vunpack.c.0.s8 %v1788
        %v1790 = vlaneseq
        %v1791 = vshrl.u32 %v1790, 7
        %v1792 = vsub.s32 %v1789, %v1791
        %v1793 = vrot.slane %v1779, %v1792
        %v1794 = vcombine.low %v1681, %v1773
        %v1795 = vcombine.high %v1681, %v1773
        %v1797 = vunpack.c.l.s4 1983009808
        %v1798 = vunpack.c.0.s8 %v1797
        %v1799 = vlaneseq
        %v1800 = vshrl.u32 %v1799, 7
        %v1801 = vsub.s32 %v1798, %v1800
        %v1802 = vrot.slane %v1794, %v1801
        %v1804 = vunpack.c.l.s4 1983009808
        %v1805 = vunpack.c.0.s8 %v1804
        %v1806 = vlaneseq
        %v1807 = vshrl.u32 %v1806, 7
        %v1808 = vsub.s32 %v1805, %v1807
        %v1809 = vrot.slane %v1795, %v1808
        %v1810 = vcombine.low %v1786, %v1802
        %v1811 = vcombine.high %v1786, %v1802
        %v1813 = vunpack.c.l.s4 1934713408
        %v1814 = vunpack.c.0.s8 %v1813
        %v1815 = vlaneseq
        %v1816 = vshrl.u32 %v1815, 7
        %v1817 = vsub.s32 %v1814, %v1816
        %v1818 = vrot.slane %v1810, %v1817
        %v1820 = vunpack.c.l.s4 1934713408
        %v1821 = vunpack.c.0.s8 %v1820
        %v1822 = vlaneseq
        %v1823 = vshrl.u32 %v1822, 7
        %v1824 = vsub.s32 %v1821, %v1823
        %v1825 = vrot.slane %v1811, %v1824
        %v1826 = vcombine.low %v1793, %v1809
        %v1827 = vcombine.high %v1793, %v1809
        %v1829 = vunpack.c.l.s4 1934713408
        %v1830 = vunpack.c.0.s8 %v1829
        %v1831 = vlaneseq
        %v1832 = vshrl.u32 %v1831, 7
        %v1833 = vsub.s32 %v1830, %v1832
        %v1834 = vrot.slane %v1826, %v1833
        %v1836 = vunpack.c.l.s4 1934713408
        %v1837 = vunpack.c.0.s8 %v1836
        %v1838 = vlaneseq
        %v1839 = vshrl.u32 %v1838, 7
        %v1840 = vsub.s32 %v1837, %v1839
        %v1841 = vrot.slane %v1827, %v1840
        %v1842 = vcombine.high %v1818, 0.0
        %v1843 = vcombine.high %v1825, 0.0
        %v1844 = vcombine.high %v1834, 0.0
        %v1845 = vcombine.high %v1841, 0.0
        %v1846 = vcombine.low %v1818, %v1825
        %v1848 = vunpack.c.l.s4 1983009808
        %v1849 = vunpack.c.0.s8 %v1848
        %v1850 = vlaneseq
        %v1851 = vshrl.u32 %v1850, 7
        %v1852 = vsub.s32 %v1849, %v1851
        %v1853 = vrot.slane %v1846, %v1852
        %v1854 = vcombine.low %v1842, %v1843
        %v1856 = vunpack.c.l.s4 1983009808
        %v1857 = vunpack.c.0.s8 %v1856
        %v1858 = vlaneseq
        %v1859 = vshrl.u32 %v1858, 7
        %v1860 = vsub.s32 %v1857, %v1859
        %v1861 = vrot.slane %v1854, %v1860
        %v1862 = vcombine.low %v1834, %v1841
        %v1864 = vunpack.c.l.s4 1983009808
        %v1865 = vunpack.c.0.s8 %v1864
        %v1866 = vlaneseq
        %v1867 = vshrl.u32 %v1866, 7
        %v1868 = vsub.s32 %v1865, %v1867
        %v1869 = vrot.slane %v1862, %v1868
        %v1870 = vcombine.low %v1844, %v1845
        %v1872 = vunpack.c.l.s4 1983009808
        %v1873 = vunpack.c.0.s8 %v1872
        %v1874 = vlaneseq
        %v1875 = vshrl.u32 %v1874, 7
        %v1876 = vsub.s32 %v1873, %v1875
        %v1877 = vrot.slane %v1870, %v1876
        %v1878 = vcombine.low %v1853, %v1861
        %v1879 = vcombine.high %v1853, %v1861
        %v1881 = vunpack.c.l.s4 1934713408
        %v1882 = vunpack.c.0.s8 %v1881
        %v1883 = vlaneseq
        %v1884 = vshrl.u32 %v1883, 7
        %v1885 = vsub.s32 %v1882, %v1884
        %v1886 = vrot.slane %v1878, %v1885
        %v1888 = vunpack.c.l.s4 1934713408
        %v1889 = vunpack.c.0.s8 %v1888
        %v1890 = vlaneseq
        %v1891 = vshrl.u32 %v1890, 7
        %v1892 = vsub.s32 %v1889, %v1891
        %v1893 = vrot.slane %v1879, %v1892
        %v1894 = vcombine.low %v1869, %v1877
        %v1895 = vcombine.high %v1869, %v1877
        %v1897 = vunpack.c.l.s4 1934713408
        %v1898 = vunpack.c.0.s8 %v1897
        %v1899 = vlaneseq
        %v1900 = vshrl.u32 %v1899, 7
        %v1901 = vsub.s32 %v1898, %v1900
        %v1902 = vrot.slane %v1894, %v1901
        %v1904 = vunpack.c.l.s4 1934713408
        %v1905 = vunpack.c.0.s8 %v1904
        %v1906 = vlaneseq
        %v1907 = vshrl.u32 %v1906, 7
        %v1908 = vsub.s32 %v1905, %v1907
        %v1909 = vrot.slane %v1895, %v1908
        %v1910 = vcombine.low %v1886, %v1902
        %v1911 = vcombine.high %v1886, %v1902
        %v1912 = vcombine.low %v1893, %v1909
        %v1913 = vcombine.high %v1893, %v1909
        %1915 = vrot.lane.b32.xlu0 %v1911, 32
        %v1916 = vpop.permute.xlu0 %1915
        %1919 = vrot.lane.b32.xlu0 %v1912, 64
        %v1920 = vpop.permute.xlu0 %1919
        %1923 = vrot.lane.b32.xlu0 %v1913, 96
        %v1924 = vpop.permute.xlu0 %1923
        %v1926 = vsel %vm1348, %v1910, %v1916
        %vm1927 = vcmask 523264
        %v1928 = vsel %vm1927, %v1926, %v1920
        %vm1929 = vcmask 785408
        %v1930 = vsel %vm1929, %v1928, %v1924
        %v1931 = vpack.c.bf16 %v1930, %v1930
        %v1932 = vld [vmem:[#allocation8] sm:$0xf]
        %v1933 = vld [vmem:[#allocation8 + $0x4] sm:$0xf]
        %v1934 = vld [vmem:[#allocation8 + $0x8] sm:$0xf]
        %v1935 = vld [vmem:[#allocation8 + $0xc] sm:$0xf]
        %v1936 = vld [vmem:[#allocation8 + $0x10] sm:$0xf]
        %v1937 = vld [vmem:[#allocation8 + $0x14] sm:$0xf]
        %v1938 = vld [vmem:[#allocation8 + $0x18] sm:$0xf]
        %v1939 = vld [vmem:[#allocation8 + $0x1c] sm:$0xf]
        %v1940 = vld [vmem:[#allocation8 + $0x20] sm:$0xf]
        %v1941 = vld [vmem:[#allocation8 + $0x24] sm:$0xf]
        %v1942 = vld [vmem:[#allocation8 + $0x28] sm:$0xf]
        %v1943 = vld [vmem:[#allocation8 + $0x2c] sm:$0xf]
        %v1944 = vld [vmem:[#allocation8 + $0x30] sm:$0xf]
        %v1945 = vld [vmem:[#allocation8 + $0x34] sm:$0xf]
        %v1946 = vld [vmem:[#allocation8 + $0x38] sm:$0xf]
        %v1947 = vld [vmem:[#allocation8 + $0x3c] sm:$0xf]
        %v1948 = vld [vmem:[#allocation10] sm:$0x1]
        %v1950 = vlaneseq
        %v1951 = vshrl.u32 %v1950, 7
        %v1952 = vsub.s32 0, %v1951
        %v1953 = vrot.slane %v1948, %v1952
        %v1971 = vunpack.c.l.b16 %v1932
        %v1972 = vunpack.c.l.b16 %v1933
        %v1973 = vunpack.c.l.b16 %v1934
        %v1974 = vunpack.c.l.b16 %v1935
        %v1975 = vunpack.c.l.b16 %v1936
        %v1976 = vunpack.c.l.b16 %v1937
        %v1977 = vunpack.c.l.b16 %v1938
        %v1978 = vunpack.c.l.b16 %v1939
        %v1979 = vunpack.c.l.b16 %v1940
        %v1980 = vunpack.c.l.b16 %v1941
        %v1981 = vunpack.c.l.b16 %v1942
        %v1982 = vunpack.c.l.b16 %v1943
        %v1983 = vunpack.c.l.b16 %v1944
        %v1984 = vunpack.c.l.b16 %v1945
        %v1985 = vunpack.c.l.b16 %v1946
        %v1986 = vunpack.c.l.b16 %v1947
        %v1987 = vpack.c.b16 %v1972, %v1971
        %v1988 = vpack.c.b16 %v1974, %v1973
        %v1989 = vpack.c.b16 %v1976, %v1975
        %v1990 = vpack.c.b16 %v1978, %v1977
        %v1991 = vpack.c.b16 %v1980, %v1979
        %v1992 = vpack.c.b16 %v1982, %v1981
        %v1993 = vpack.c.b16 %v1984, %v1983
        %v1994 = vpack.c.b16 %v1986, %v1985
        %2003 = vmatprep.subr.bf16.mxu0 0
        %2004 = vmatpush1.bf16.msra.mxu0 %v1994
        %2005 = vmatprep.subr.bf16.mxu0 0
        %2006 = vmatpush1.bf16.msra.mxu0 %v1993
        %2007 = vmatprep.subr.bf16.mxu0 0
        %2008 = vmatpush1.bf16.msra.mxu0 %v1992
        %2009 = vmatprep.subr.bf16.mxu0 0
        %2010 = vmatpush1.bf16.msra.mxu0 %v1991
        %2011 = vmatprep.subr.bf16.mxu0 0
        %2012 = vmatpush1.bf16.msra.mxu0 %v1990
        %2013 = vmatprep.subr.bf16.mxu0 0
        %2014 = vmatpush1.bf16.msra.mxu0 %v1989
        %2015 = vmatprep.subr.bf16.mxu0 0
        %2016 = vmatpush1.bf16.msra.mxu0 %v1988
        %2017 = vmatprep.subr.bf16.mxu0 0
        %2018 = vmatpush1.bf16.msra.mxu0 %v1987
        %2019 = vmatprep.subr.bf16.mxu0 0
        %2020 = vmatpush2.bf16.msra.mxu0 0
        %2021 = vmatprep.subr.bf16.mxu0 0
        %2022 = vmatpush2.bf16.msra.mxu0 0
        %2023 = vmatprep.subr.bf16.mxu0 0
        %2024 = vmatpush2.bf16.msra.mxu0 0
        %2025 = vmatprep.subr.bf16.mxu0 0
        %2026 = vmatpush2.bf16.msra.mxu0 0
        %2027 = vmatprep.subr.bf16.mxu0 0
        %2028 = vmatpush2.bf16.msra.mxu0 0
        %2029 = vmatprep.subr.bf16.mxu0 0
        %2030 = vmatpush2.bf16.msra.mxu0 0
        %2031 = vmatprep.subr.bf16.mxu0 0
        %2032 = vmatpush2.bf16.msra.mxu0 0
        %2033 = vmatprep.subr.bf16.mxu0 0
        %2034 = vmatpush2.bf16.msra.mxu0 0
        %2035 = vmatprep.mubr.bf16.mxu0 0
        %2036 = vmatmul.mubr.bf16.gmra.mxu0 %v1931
        %v2037 = vpop.f32.mrf.mxu0
        %v2038 = vadd.f32 %v1953, %v2037
        %v2039 = vpop.f32.mrf.mxu0
        %v2040 = vpop.f32.mrf.mxu0
        %v2041 = vpop.f32.mrf.mxu0
        %2042 = vdwg.mxu0
        %v2043 = vadd.f32 %v553, %v2038
        %v2044 = vld [vmem:[%s7] sm:$0x1]
        %v2045 = vld [vmem:[%s8] sm:$0x1]
        %2046 = vadd.xlane.f32.xlu0 %v2043
        %v2047 = vpop.xlane.xlu0 %2046
        %v2048 = vmul.f32 %v2047, %v558
        %v2049 = vsub.f32 %v2043, %v2048
        %v2050 = vmul.f32 %v2049, %v2049
        %2051 = vadd.xlane.f32.xlu0 %v2050
        %v2052 = vpop.xlane.xlu0 %2051
        %v2053 = vmul.f32 %v2052, %v558
        %v2054 = vadd.f32 %v2053, 1e-05
        %v2055 = vrsqrt.pop %v2054
        %v2056 = vmul.f32 %v2049, %v2055
        %v2058 = vlaneseq
        %v2059 = vshrl.u32 %v2058, 7
        %v2060 = vsub.s32 0, %v2059
        %v2061 = vrot.slane %v2044, %v2060
        %v2063 = vmul.f32 %v2056, %v2061
        %v2065 = vlaneseq
        %v2066 = vshrl.u32 %v2065, 7
        %v2067 = vsub.s32 0, %v2066
        %v2068 = vrot.slane %v2045, %v2067
        %v2070 = vadd.f32 %v2063, %v2068
        %v2071 = vpack.c.bf16 %v2070, %v2070
        %v2072 = vld [vmem:[#allocation11] sm:$0xff]
        %v2073 = vld [vmem:[#allocation11 + $0x8] sm:$0xff]
        %v2074 = vld [vmem:[#allocation11 + $0x10] sm:$0xff]
        %v2075 = vld [vmem:[#allocation11 + $0x18] sm:$0xff]
        %v2076 = vld [vmem:[#allocation11 + $0x20] sm:$0xff]
        %v2077 = vld [vmem:[#allocation11 + $0x28] sm:$0xff]
        %v2078 = vld [vmem:[#allocation11 + $0x30] sm:$0xff]
        %v2079 = vld [vmem:[#allocation11 + $0x38] sm:$0xff]
        %v2080 = vld [vmem:[#allocation11 + $0x40] sm:$0xff]
        %v2081 = vld [vmem:[#allocation11 + $0x48] sm:$0xff]
        %v2082 = vld [vmem:[#allocation11 + $0x50] sm:$0xff]
        %v2083 = vld [vmem:[#allocation11 + $0x58] sm:$0xff]
        %v2084 = vld [vmem:[#allocation11 + $0x60] sm:$0xff]
        %v2085 = vld [vmem:[#allocation11 + $0x68] sm:$0xff]
        %v2086 = vld [vmem:[#allocation11 + $0x70] sm:$0xff]
        %v2087 = vld [vmem:[#allocation11 + $0x78] sm:$0xff]
        %v2088 = vld [vmem:[#allocation11 + $0x80] sm:$0xff]
        %v2089 = vld [vmem:[#allocation11 + $0x88] sm:$0xff]
        %v2090 = vld [vmem:[#allocation11 + $0x90] sm:$0xff]
        %v2091 = vld [vmem:[#allocation11 + $0x98] sm:$0xff]
        %v2092 = vld [vmem:[#allocation11 + $0xa0] sm:$0xff]
        %v2093 = vld [vmem:[#allocation11 + $0xa8] sm:$0xff]
        %v2094 = vld [vmem:[#allocation11 + $0xb0] sm:$0xff]
        %v2095 = vld [vmem:[#allocation11 + $0xb8] sm:$0xff]
        %v2096 = vld [vmem:[#allocation11 + $0xc0] sm:$0xff]
        %v2097 = vld [vmem:[#allocation11 + $0xc8] sm:$0xff]
        %v2098 = vld [vmem:[#allocation11 + $0xd0] sm:$0xff]
        %v2099 = vld [vmem:[#allocation11 + $0xd8] sm:$0xff]
        %v2100 = vld [vmem:[#allocation11 + $0xe0] sm:$0xff]
        %v2101 = vld [vmem:[#allocation11 + $0xe8] sm:$0xff]
        %v2102 = vld [vmem:[#allocation11 + $0xf0] sm:$0xff]
        %v2103 = vld [vmem:[#allocation11 + $0xf8] sm:$0xff]
        %v2104 = vld [vmem:[%s10] sm:$0xf]
        %v2106 = vlaneseq
        %v2107 = vshrl.u32 %v2106, 7
        %v2108 = vsub.s32 0, %v2107
        %v2109 = vrot.slane %v2104, %v2108
        %v2110 = vlaneseq
        %v2111 = vshrl.u32 %v2110, 7
        %v2112 = vsub.s32 1, %v2111
        %v2113 = vrot.slane %v2104, %v2112
        %v2114 = vlaneseq
        %v2115 = vshrl.u32 %v2114, 7
        %v2116 = vsub.s32 2, %v2115
        %v2117 = vrot.slane %v2104, %v2116
        %v2118 = vlaneseq
        %v2119 = vshrl.u32 %v2118, 7
        %v2120 = vsub.s32 3, %v2119
        %v2121 = vrot.slane %v2104, %v2120
        %v2158 = vunpack.c.l.b16 %v2072
        %v2159 = vunpack.c.h.b16 %v2072
        %v2160 = vunpack.c.l.b16 %v2073
        %v2161 = vunpack.c.h.b16 %v2073
        %v2162 = vunpack.c.l.b16 %v2074
        %v2163 = vunpack.c.h.b16 %v2074
        %v2164 = vunpack.c.l.b16 %v2075
        %v2165 = vunpack.c.h.b16 %v2075
        %v2166 = vunpack.c.l.b16 %v2076
        %v2167 = vunpack.c.h.b16 %v2076
        %v2168 = vunpack.c.l.b16 %v2077
        %v2169 = vunpack.c.h.b16 %v2077
        %v2170 = vunpack.c.l.b16 %v2078
        %v2171 = vunpack.c.h.b16 %v2078
        %v2172 = vunpack.c.l.b16 %v2079
        %v2173 = vunpack.c.h.b16 %v2079
        %v2174 = vunpack.c.l.b16 %v2080
        %v2175 = vunpack.c.h.b16 %v2080
        %v2176 = vunpack.c.l.b16 %v2081
        %v2177 = vunpack.c.h.b16 %v2081
        %v2178 = vunpack.c.l.b16 %v2082
        %v2179 = vunpack.c.h.b16 %v2082
        %v2180 = vunpack.c.l.b16 %v2083
        %v2181 = vunpack.c.h.b16 %v2083
        %v2182 = vunpack.c.l.b16 %v2084
        %v2183 = vunpack.c.h.b16 %v2084
        %v2184 = vunpack.c.l.b16 %v2085
        %v2185 = vunpack.c.h.b16 %v2085
        %v2186 = vunpack.c.l.b16 %v2086
        %v2187 = vunpack.c.h.b16 %v2086
        %v2188 = vunpack.c.l.b16 %v2087
        %v2189 = vunpack.c.h.b16 %v2087
        %v2190 = vunpack.c.l.b16 %v2088
        %v2191 = vunpack.c.h.b16 %v2088
        %v2192 = vunpack.c.l.b16 %v2089
        %v2193 = vunpack.c.h.b16 %v2089
        %v2194 = vunpack.c.l.b16 %v2090
        %v2195 = vunpack.c.h.b16 %v2090
        %v2196 = vunpack.c.l.b16 %v2091
        %v2197 = vunpack.c.h.b16 %v2091
        %v2198 = vunpack.c.l.b16 %v2092
        %v2199 = vunpack.c.h.b16 %v2092
        %v2200 = vunpack.c.l.b16 %v2093
        %v2201 = vunpack.c.h.b16 %v2093
        %v2202 = vunpack.c.l.b16 %v2094
        %v2203 = vunpack.c.h.b16 %v2094
        %v2204 = vunpack.c.l.b16 %v2095
        %v2205 = vunpack.c.h.b16 %v2095
        %v2206 = vunpack.c.l.b16 %v2096
        %v2207 = vunpack.c.h.b16 %v2096
        %v2208 = vunpack.c.l.b16 %v2097
        %v2209 = vunpack.c.h.b16 %v2097
        %v2210 = vunpack.c.l.b16 %v2098
        %v2211 = vunpack.c.h.b16 %v2098
        %v2212 = vunpack.c.l.b16 %v2099
        %v2213 = vunpack.c.h.b16 %v2099
        %v2214 = vunpack.c.l.b16 %v2100
        %v2215 = vunpack.c.h.b16 %v2100
        %v2216 = vunpack.c.l.b16 %v2101
        %v2217 = vunpack.c.h.b16 %v2101
        %v2218 = vunpack.c.l.b16 %v2102
        %v2219 = vunpack.c.h.b16 %v2102
        %v2220 = vunpack.c.l.b16 %v2103
        %v2221 = vunpack.c.h.b16 %v2103
        %v2222 = vpack.c.b16 %v2162, %v2158
        %v2223 = vpack.c.b16 %v2163, %v2159
        %v2224 = vpack.c.b16 %v2164, %v2160
        %v2225 = vpack.c.b16 %v2165, %v2161
        %v2226 = vpack.c.b16 %v2170, %v2166
        %v2227 = vpack.c.b16 %v2171, %v2167
        %v2228 = vpack.c.b16 %v2172, %v2168
        %v2229 = vpack.c.b16 %v2173, %v2169
        %v2230 = vpack.c.b16 %v2178, %v2174
        %v2231 = vpack.c.b16 %v2179, %v2175
        %v2232 = vpack.c.b16 %v2180, %v2176
        %v2233 = vpack.c.b16 %v2181, %v2177
        %v2234 = vpack.c.b16 %v2186, %v2182
        %v2235 = vpack.c.b16 %v2187, %v2183
        %v2236 = vpack.c.b16 %v2188, %v2184
        %v2237 = vpack.c.b16 %v2189, %v2185
        %v2238 = vpack.c.b16 %v2194, %v2190
        %v2239 = vpack.c.b16 %v2195, %v2191
        %v2240 = vpack.c.b16 %v2196, %v2192
        %v2241 = vpack.c.b16 %v2197, %v2193
        %v2242 = vpack.c.b16 %v2202, %v2198
        %v2243 = vpack.c.b16 %v2203, %v2199
        %v2244 = vpack.c.b16 %v2204, %v2200
        %v2245 = vpack.c.b16 %v2205, %v2201
        %v2246 = vpack.c.b16 %v2210, %v2206
        %v2247 = vpack.c.b16 %v2211, %v2207
        %v2248 = vpack.c.b16 %v2212, %v2208
        %v2249 = vpack.c.b16 %v2213, %v2209
        %v2250 = vpack.c.b16 %v2218, %v2214
        %v2251 = vpack.c.b16 %v2219, %v2215
        %v2252 = vpack.c.b16 %v2220, %v2216
        %v2253 = vpack.c.b16 %v2221, %v2217
        %2286 = vmatprep.subr.bf16.mxu0 %v2251
        %2287 = vmatpush1.bf16.msra.mxu0 %v2250
        %2288 = vmatprep.subr.bf16.mxu0 %v2247
        %2289 = vmatpush1.bf16.msra.mxu0 %v2246
        %2290 = vmatprep.subr.bf16.mxu0 %v2243
        %2291 = vmatpush1.bf16.msra.mxu0 %v2242
        %2292 = vmatprep.subr.bf16.mxu0 %v2239
        %2293 = vmatpush1.bf16.msra.mxu0 %v2238
        %2294 = vmatprep.subr.bf16.mxu0 %v2235
        %2295 = vmatpush1.bf16.msra.mxu0 %v2234
        %2296 = vmatprep.subr.bf16.mxu0 %v2231
        %2297 = vmatpush1.bf16.msra.mxu0 %v2230
        %2298 = vmatprep.subr.bf16.mxu0 %v2227
        %2299 = vmatpush1.bf16.msra.mxu0 %v2226
        %2300 = vmatprep.subr.bf16.mxu0 %v2223
        %2301 = vmatpush1.bf16.msra.mxu0 %v2222
        %2302 = vmatprep.subr.bf16.mxu0 0
        %2303 = vmatpush2.bf16.msra.mxu0 0
        %2304 = vmatprep.subr.bf16.mxu0 0
        %2305 = vmatpush2.bf16.msra.mxu0 0
        %2306 = vmatprep.subr.bf16.mxu0 0
        %2307 = vmatpush2.bf16.msra.mxu0 0
        %2308 = vmatprep.subr.bf16.mxu0 0
        %2309 = vmatpush2.bf16.msra.mxu0 0
        %2310 = vmatprep.subr.bf16.mxu0 0
        %2311 = vmatpush2.bf16.msra.mxu0 0
        %2312 = vmatprep.subr.bf16.mxu0 0
        %2313 = vmatpush2.bf16.msra.mxu0 0
        %2314 = vmatprep.subr.bf16.mxu0 0
        %2315 = vmatpush2.bf16.msra.mxu0 0
        %2316 = vmatprep.subr.bf16.mxu0 0
        %2317 = vmatpush2.bf16.msra.mxu0 0
        %2318 = vmatprep.mubr.bf16.mxu0 0
        %2319 = vmatmul.mubr.bf16.gmra.mxu0 %v2071
        %v2320 = vpop.f32.mrf.mxu0
        %v2321 = vadd.f32 %v2109, %v2320
        %v2322 = vpop.f32.mrf.mxu0
        %v2323 = vadd.f32 %v2113, %v2322
        %v2324 = vpop.f32.mrf.mxu0
        %v2325 = vpop.f32.mrf.mxu0
        %2326 = vdwg.mxu0
        %2327 = vmatprep.subr.bf16.mxu0 %v2253
        %2328 = vmatpush1.bf16.msra.mxu0 %v2252
        %2329 = vmatprep.subr.bf16.mxu0 %v2249
        %2330 = vmatpush1.bf16.msra.mxu0 %v2248
        %2331 = vmatprep.subr.bf16.mxu0 %v2245
        %2332 = vmatpush1.bf16.msra.mxu0 %v2244
        %2333 = vmatprep.subr.bf16.mxu0 %v2241
        %2334 = vmatpush1.bf16.msra.mxu0 %v2240
        %2335 = vmatprep.subr.bf16.mxu0 %v2237
        %2336 = vmatpush1.bf16.msra.mxu0 %v2236
        %2337 = vmatprep.subr.bf16.mxu0 %v2233
        %2338 = vmatpush1.bf16.msra.mxu0 %v2232
        %2339 = vmatprep.subr.bf16.mxu0 %v2229
        %2340 = vmatpush1.bf16.msra.mxu0 %v2228
        %2341 = vmatprep.subr.bf16.mxu0 %v2225
        %2342 = vmatpush1.bf16.msra.mxu0 %v2224
        %2343 = vmatprep.subr.bf16.mxu0 0
        %2344 = vmatpush2.bf16.msra.mxu0 0
        %2345 = vmatprep.subr.bf16.mxu0 0
        %2346 = vmatpush2.bf16.msra.mxu0 0
        %2347 = vmatprep.subr.bf16.mxu0 0
        %2348 = vmatpush2.bf16.msra.mxu0 0
        %2349 = vmatprep.subr.bf16.mxu0 0
        %2350 = vmatpush2.bf16.msra.mxu0 0
        %2351 = vmatprep.subr.bf16.mxu0 0
        %2352 = vmatpush2.bf16.msra.mxu0 0
        %2353 = vmatprep.subr.bf16.mxu0 0
        %2354 = vmatpush2.bf16.msra.mxu0 0
        %2355 = vmatprep.subr.bf16.mxu0 0
        %2356 = vmatpush2.bf16.msra.mxu0 0
        %2357 = vmatprep.subr.bf16.mxu0 0
        %2358 = vmatpush2.bf16.msra.mxu0 0
        %2359 = vmatprep.mubr.bf16.mxu0 0
        %2360 = vmatmul.mubr.bf16.gmra.mxu0 %v2071
        %v2361 = vpop.f32.mrf.mxu0
        %v2362 = vadd.f32 %v2117, %v2361
        %v2363 = vpop.f32.mrf.mxu0
        %v2364 = vadd.f32 %v2121, %v2363
        %v2365 = vpop.f32.mrf.mxu0
        %v2366 = vpop.f32.mrf.mxu0
        %2367 = vdwg.mxu0
        %v2368 = vmul.f32 %v2321, 0.5
        %v2369 = vmul.f32 %v2323, 0.5
        %v2370 = vmul.f32 %v2362, 0.5
        %v2371 = vmul.f32 %v2364, 0.5
        %v2372 = vmul.f32 %v2321, 0.044715
        %v2373 = vmul.f32 %v2323, 0.044715
        %v2374 = vmul.f32 %v2362, 0.044715
        %v2375 = vmul.f32 %v2364, 0.044715
        %v2376 = vmul.f32 %v2372, %v2321
        %v2377 = vmul.f32 %v2373, %v2323
        %v2378 = vmul.f32 %v2374, %v2362
        %v2379 = vmul.f32 %v2375, %v2364
        %v2380 = vmul.f32 %v2376, %v2321
        %v2381 = vmul.f32 %v2377, %v2323
        %v2382 = vmul.f32 %v2378, %v2362
        %v2383 = vmul.f32 %v2379, %v2364
        %v2384 = vadd.f32 %v2321, %v2380
        %v2385 = vadd.f32 %v2323, %v2381
        %v2386 = vadd.f32 %v2362, %v2382
        %v2387 = vadd.f32 %v2364, %v2383
        %v2388 = vmul.f32 %v2384, 0.7978846
        %v2389 = vmul.f32 %v2385, 0.7978846
        %v2390 = vmul.f32 %v2386, 0.7978846
        %v2391 = vmul.f32 %v2387, 0.7978846
        %v2392 = vtanh.pop %v2388
        %v2393 = vtanh.pop %v2389
        %v2394 = vtanh.pop %v2390
        %v2395 = vtanh.pop %v2391
        %v2396 = vadd.f32 %v2392, 1.0
        %v2397 = vadd.f32 %v2393, 1.0
        %v2398 = vadd.f32 %v2394, 1.0
        %v2399 = vadd.f32 %v2395, 1.0
        %v2400 = vmul.f32 %v2368, %v2396
        %v2401 = vmul.f32 %v2369, %v2397
        %v2402 = vmul.f32 %v2370, %v2398
        %v2403 = vmul.f32 %v2371, %v2399
        %v2404 = vpack.c.bf16 %v2400, %v2400
        %v2405 = vpack.c.bf16 %v2401, %v2401
        %v2406 = vpack.c.bf16 %v2402, %v2402
        %v2407 = vpack.c.bf16 %v2403, %v2403
        %v2408 = vld [vmem:[#allocation13] sm:$0xf]
        %v2409 = vld [vmem:[#allocation13 + $0x4] sm:$0xf]
        %v2410 = vld [vmem:[#allocation13 + $0x8] sm:$0xf]
        %v2411 = vld [vmem:[#allocation13 + $0xc] sm:$0xf]
        %v2412 = vld [vmem:[#allocation13 + $0x10] sm:$0xf]
        %v2413 = vld [vmem:[#allocation13 + $0x14] sm:$0xf]
        %v2414 = vld [vmem:[#allocation13 + $0x18] sm:$0xf]
        %v2415 = vld [vmem:[#allocation13 + $0x1c] sm:$0xf]
        %v2416 = vld [vmem:[#allocation13 + $0x20] sm:$0xf]
        %v2417 = vld [vmem:[#allocation13 + $0x24] sm:$0xf]
        %v2418 = vld [vmem:[#allocation13 + $0x28] sm:$0xf]
        %v2419 = vld [vmem:[#allocation13 + $0x2c] sm:$0xf]
        %v2420 = vld [vmem:[#allocation13 + $0x30] sm:$0xf]
        %v2421 = vld [vmem:[#allocation13 + $0x34] sm:$0xf]
        %v2422 = vld [vmem:[#allocation13 + $0x38] sm:$0xf]
        %v2423 = vld [vmem:[#allocation13 + $0x3c] sm:$0xf]
        %v2424 = vld [vmem:[#allocation13 + $0x40] sm:$0xf]
        %v2425 = vld [vmem:[#allocation13 + $0x44] sm:$0xf]
        %v2426 = vld [vmem:[#allocation13 + $0x48] sm:$0xf]
        %v2427 = vld [vmem:[#allocation13 + $0x4c] sm:$0xf]
        %v2428 = vld [vmem:[#allocation13 + $0x50] sm:$0xf]
        %v2429 = vld [vmem:[#allocation13 + $0x54] sm:$0xf]
        %v2430 = vld [vmem:[#allocation13 + $0x58] sm:$0xf]
        %v2431 = vld [vmem:[#allocation13 + $0x5c] sm:$0xf]
        %v2432 = vld [vmem:[#allocation13 + $0x60] sm:$0xf]
        %v2433 = vld [vmem:[#allocation13 + $0x64] sm:$0xf]
        %v2434 = vld [vmem:[#allocation13 + $0x68] sm:$0xf]
        %v2435 = vld [vmem:[#allocation13 + $0x6c] sm:$0xf]
        %v2436 = vld [vmem:[#allocation13 + $0x70] sm:$0xf]
        %v2437 = vld [vmem:[#allocation13 + $0x74] sm:$0xf]
        %v2438 = vld [vmem:[#allocation13 + $0x78] sm:$0xf]
        %v2439 = vld [vmem:[#allocation13 + $0x7c] sm:$0xf]
        %v2440 = vld [vmem:[#allocation13 + $0x80] sm:$0xf]
        %v2441 = vld [vmem:[#allocation13 + $0x84] sm:$0xf]
        %v2442 = vld [vmem:[#allocation13 + $0x88] sm:$0xf]
        %v2443 = vld [vmem:[#allocation13 + $0x8c] sm:$0xf]
        %v2444 = vld [vmem:[#allocation13 + $0x90] sm:$0xf]
        %v2445 = vld [vmem:[#allocation13 + $0x94] sm:$0xf]
        %v2446 = vld [vmem:[#allocation13 + $0x98] sm:$0xf]
        %v2447 = vld [vmem:[#allocation13 + $0x9c] sm:$0xf]
        %v2448 = vld [vmem:[#allocation13 + $0xa0] sm:$0xf]
        %v2449 = vld [vmem:[#allocation13 + $0xa4] sm:$0xf]
        %v2450 = vld [vmem:[#allocation13 + $0xa8] sm:$0xf]
        %v2451 = vld [vmem:[#allocation13 + $0xac] sm:$0xf]
        %v2452 = vld [vmem:[#allocation13 + $0xb0] sm:$0xf]
        %v2453 = vld [vmem:[#allocation13 + $0xb4] sm:$0xf]
        %v2454 = vld [vmem:[#allocation13 + $0xb8] sm:$0xf]
        %v2455 = vld [vmem:[#allocation13 + $0xbc] sm:$0xf]
        %v2456 = vld [vmem:[#allocation13 + $0xc0] sm:$0xf]
        %v2457 = vld [vmem:[#allocation13 + $0xc4] sm:$0xf]
        %v2458 = vld [vmem:[#allocation13 + $0xc8] sm:$0xf]
        %v2459 = vld [vmem:[#allocation13 + $0xcc] sm:$0xf]
        %v2460 = vld [vmem:[#allocation13 + $0xd0] sm:$0xf]
        %v2461 = vld [vmem:[#allocation13 + $0xd4] sm:$0xf]
        %v2462 = vld [vmem:[#allocation13 + $0xd8] sm:$0xf]
        %v2463 = vld [vmem:[#allocation13 + $0xdc] sm:$0xf]
        %v2464 = vld [vmem:[#allocation13 + $0xe0] sm:$0xf]
        %v2465 = vld [vmem:[#allocation13 + $0xe4] sm:$0xf]
        %v2466 = vld [vmem:[#allocation13 + $0xe8] sm:$0xf]
        %v2467 = vld [vmem:[#allocation13 + $0xec] sm:$0xf]
        %v2468 = vld [vmem:[#allocation13 + $0xf0] sm:$0xf]
        %v2469 = vld [vmem:[#allocation13 + $0xf4] sm:$0xf]
        %v2470 = vld [vmem:[#allocation13 + $0xf8] sm:$0xf]
        %v2471 = vld [vmem:[#allocation13 + $0xfc] sm:$0xf]
        %v2536 = vunpack.c.l.b16 %v2408
        %v2537 = vunpack.c.l.b16 %v2409
        %v2538 = vunpack.c.l.b16 %v2410
        %v2539 = vunpack.c.l.b16 %v2411
        %v2540 = vunpack.c.l.b16 %v2412
        %v2541 = vunpack.c.l.b16 %v2413
        %v2542 = vunpack.c.l.b16 %v2414
        %v2543 = vunpack.c.l.b16 %v2415
        %v2544 = vunpack.c.l.b16 %v2416
        %v2545 = vunpack.c.l.b16 %v2417
        %v2546 = vunpack.c.l.b16 %v2418
        %v2547 = vunpack.c.l.b16 %v2419
        %v2548 = vunpack.c.l.b16 %v2420
        %v2549 = vunpack.c.l.b16 %v2421
        %v2550 = vunpack.c.l.b16 %v2422
        %v2551 = vunpack.c.l.b16 %v2423
        %v2552 = vunpack.c.l.b16 %v2424
        %v2553 = vunpack.c.l.b16 %v2425
        %v2554 = vunpack.c.l.b16 %v2426
        %v2555 = vunpack.c.l.b16 %v2427
        %v2556 = vunpack.c.l.b16 %v2428
        %v2557 = vunpack.c.l.b16 %v2429
        %v2558 = vunpack.c.l.b16 %v2430
        %v2559 = vunpack.c.l.b16 %v2431
        %v2560 = vunpack.c.l.b16 %v2432
        %v2561 = vunpack.c.l.b16 %v2433
        %v2562 = vunpack.c.l.b16 %v2434
        %v2563 = vunpack.c.l.b16 %v2435
        %v2564 = vunpack.c.l.b16 %v2436
        %v2565 = vunpack.c.l.b16 %v2437
        %v2566 = vunpack.c.l.b16 %v2438
        %v2567 = vunpack.c.l.b16 %v2439
        %v2568 = vunpack.c.l.b16 %v2440
        %v2569 = vunpack.c.l.b16 %v2441
        %v2570 = vunpack.c.l.b16 %v2442
        %v2571 = vunpack.c.l.b16 %v2443
        %v2572 = vunpack.c.l.b16 %v2444
        %v2573 = vunpack.c.l.b16 %v2445
        %v2574 = vunpack.c.l.b16 %v2446
        %v2575 = vunpack.c.l.b16 %v2447
        %v2576 = vunpack.c.l.b16 %v2448
        %v2577 = vunpack.c.l.b16 %v2449
        %v2578 = vunpack.c.l.b16 %v2450
        %v2579 = vunpack.c.l.b16 %v2451
        %v2580 = vunpack.c.l.b16 %v2452
        %v2581 = vunpack.c.l.b16 %v2453
        %v2582 = vunpack.c.l.b16 %v2454
        %v2583 = vunpack.c.l.b16 %v2455
        %v2584 = vunpack.c.l.b16 %v2456
        %v2585 = vunpack.c.l.b16 %v2457
        %v2586 = vunpack.c.l.b16 %v2458
        %v2587 = vunpack.c.l.b16 %v2459
        %v2588 = vunpack.c.l.b16 %v2460
        %v2589 = vunpack.c.l.b16 %v2461
        %v2590 = vunpack.c.l.b16 %v2462
        %v2591 = vunpack.c.l.b16 %v2463
        %v2592 = vunpack.c.l.b16 %v2464
        %v2593 = vunpack.c.l.b16 %v2465
        %v2594 = vunpack.c.l.b16 %v2466
        %v2595 = vunpack.c.l.b16 %v2467
        %v2596 = vunpack.c.l.b16 %v2468
        %v2597 = vunpack.c.l.b16 %v2469
        %v2598 = vunpack.c.l.b16 %v2470
        %v2599 = vunpack.c.l.b16 %v2471
        %v2600 = vpack.c.b16 %v2537, %v2536
        %v2601 = vpack.c.b16 %v2539, %v2538
        %v2602 = vpack.c.b16 %v2541, %v2540
        %v2603 = vpack.c.b16 %v2543, %v2542
        %v2604 = vpack.c.b16 %v2545, %v2544
        %v2605 = vpack.c.b16 %v2547, %v2546
        %v2606 = vpack.c.b16 %v2549, %v2548
        %v2607 = vpack.c.b16 %v2551, %v2550
        %v2608 = vpack.c.b16 %v2553, %v2552
        %v2609 = vpack.c.b16 %v2555, %v2554
        %v2610 = vpack.c.b16 %v2557, %v2556
        %v2611 = vpack.c.b16 %v2559, %v2558
        %v2612 = vpack.c.b16 %v2561, %v2560
        %v2613 = vpack.c.b16 %v2563, %v2562
        %v2614 = vpack.c.b16 %v2565, %v2564
        %v2615 = vpack.c.b16 %v2567, %v2566
        %v2616 = vpack.c.b16 %v2569, %v2568
        %v2617 = vpack.c.b16 %v2571, %v2570
        %v2618 = vpack.c.b16 %v2573, %v2572
        %v2619 = vpack.c.b16 %v2575, %v2574
        %v2620 = vpack.c.b16 %v2577, %v2576
        %v2621 = vpack.c.b16 %v2579, %v2578
        %v2622 = vpack.c.b16 %v2581, %v2580
        %v2623 = vpack.c.b16 %v2583, %v2582
        %v2624 = vpack.c.b16 %v2585, %v2584
        %v2625 = vpack.c.b16 %v2587, %v2586
        %v2626 = vpack.c.b16 %v2589, %v2588
        %v2627 = vpack.c.b16 %v2591, %v2590
        %v2628 = vpack.c.b16 %v2593, %v2592
        %v2629 = vpack.c.b16 %v2595, %v2594
        %v2630 = vpack.c.b16 %v2597, %v2596
        %v2631 = vpack.c.b16 %v2599, %v2598
        %2664 = vmatprep.subr.bf16.mxu0 0
        %2665 = vmatpush1.bf16.msra.mxu0 %v2607
        %2666 = vmatprep.subr.bf16.mxu0 0
        %2667 = vmatpush1.bf16.msra.mxu0 %v2606
        %2668 = vmatprep.subr.bf16.mxu0 0
        %2669 = vmatpush1.bf16.msra.mxu0 %v2605
        %2670 = vmatprep.subr.bf16.mxu0 0
        %2671 = vmatpush1.bf16.msra.mxu0 %v2604
        %2672 = vmatprep.subr.bf16.mxu0 0
        %2673 = vmatpush1.bf16.msra.mxu0 %v2603
        %2674 = vmatprep.subr.bf16.mxu0 0
        %2675 = vmatpush1.bf16.msra.mxu0 %v2602
        %2676 = vmatprep.subr.bf16.mxu0 0
        %2677 = vmatpush1.bf16.msra.mxu0 %v2601
        %2678 = vmatprep.subr.bf16.mxu0 0
        %2679 = vmatpush1.bf16.msra.mxu0 %v2600
        %2680 = vmatprep.subr.bf16.mxu0 0
        %2681 = vmatpush2.bf16.msra.mxu0 %v2615
        %2682 = vmatprep.subr.bf16.mxu0 0
        %2683 = vmatpush2.bf16.msra.mxu0 %v2614
        %2684 = vmatprep.subr.bf16.mxu0 0
        %2685 = vmatpush2.bf16.msra.mxu0 %v2613
        %2686 = vmatprep.subr.bf16.mxu0 0
        %2687 = vmatpush2.bf16.msra.mxu0 %v2612
        %2688 = vmatprep.subr.bf16.mxu0 0
        %2689 = vmatpush2.bf16.msra.mxu0 %v2611
        %2690 = vmatprep.subr.bf16.mxu0 0
        %2691 = vmatpush2.bf16.msra.mxu0 %v2610
        %2692 = vmatprep.subr.bf16.mxu0 0
        %2693 = vmatpush2.bf16.msra.mxu0 %v2609
        %2694 = vmatprep.subr.bf16.mxu0 0
        %2695 = vmatpush2.bf16.msra.mxu0 %v2608
        %2696 = vmatprep.mubr.bf16.mxu0 %v2405
        %2697 = vmatmul.mubr.bf16.gmra.mxu0 %v2404
        %v2698 = vpop.f32.mrf.mxu0
        %v2699 = vadd.f32 0.0, %v2698
        %v2700 = vpop.f32.mrf.mxu0
        %v2701 = vpop.f32.mrf.mxu0
        %v2702 = vpop.f32.mrf.mxu0
        %2703 = vdwg.mxu0
        %2704 = vmatprep.subr.bf16.mxu0 0
        %2705 = vmatpush1.bf16.msra.mxu0 %v2623
        %2706 = vmatprep.subr.bf16.mxu0 0
        %2707 = vmatpush1.bf16.msra.mxu0 %v2622
        %2708 = vmatprep.subr.bf16.mxu0 0
        %2709 = vmatpush1.bf16.msra.mxu0 %v2621
        %2710 = vmatprep.subr.bf16.mxu0 0
        %2711 = vmatpush1.bf16.msra.mxu0 %v2620
        %2712 = vmatprep.subr.bf16.mxu0 0
        %2713 = vmatpush1.bf16.msra.mxu0 %v2619
        %2714 = vmatprep.subr.bf16.mxu0 0
        %2715 = vmatpush1.bf16.msra.mxu0 %v2618
        %2716 = vmatprep.subr.bf16.mxu0 0
        %2717 = vmatpush1.bf16.msra.mxu0 %v2617
        %2718 = vmatprep.subr.bf16.mxu0 0
        %2719 = vmatpush1.bf16.msra.mxu0 %v2616
        %2720 = vmatprep.subr.bf16.mxu0 0
        %2721 = vmatpush2.bf16.msra.mxu0 %v2631
        %2722 = vmatprep.subr.bf16.mxu0 0
        %2723 = vmatpush2.bf16.msra.mxu0 %v2630
        %2724 = vmatprep.subr.bf16.mxu0 0
        %2725 = vmatpush2.bf16.msra.mxu0 %v2629
        %2726 = vmatprep.subr.bf16.mxu0 0
        %2727 = vmatpush2.bf16.msra.mxu0 %v2628
        %2728 = vmatprep.subr.bf16.mxu0 0
        %2729 = vmatpush2.bf16.msra.mxu0 %v2627
        %2730 = vmatprep.subr.bf16.mxu0 0
        %2731 = vmatpush2.bf16.msra.mxu0 %v2626
        %2732 = vmatprep.subr.bf16.mxu0 0
        %2733 = vmatpush2.bf16.msra.mxu0 %v2625
        %2734 = vmatprep.subr.bf16.mxu0 0
        %2735 = vmatpush2.bf16.msra.mxu0 %v2624
        %2736 = vmatprep.mubr.bf16.mxu0 %v2407
        %2737 = vmatmul.mubr.bf16.gmra.mxu0 %v2406
        %v2738 = vpop.f32.mrf.mxu0
        %v2739 = vadd.f32 %v2699, %v2738
        %v2740 = vpop.f32.mrf.mxu0
        %v2741 = vpop.f32.mrf.mxu0
        %v2742 = vpop.f32.mrf.mxu0
        %2743 = vdwg.mxu0
        %v2744 = vadd.f32 %v2043, %v2739
        %v2745 = vld [vmem:[#allocation14] sm:$0x1]
        %v2747 = vlaneseq
        %v2748 = vshrl.u32 %v2747, 7
        %v2749 = vsub.s32 0, %v2748
        %v2750 = vrot.slane %v2745, %v2749
        %v2752 = vadd.f32 %v2744, %v2750
        %2753 = vst [vmem:[%s551] sm:$0xff] %v2752
        %s2754 = sand.u32 %s320, 1
        %s2755 = scalar_lea.sflag [#allocation4], %s2754
        %s2756 = sand.u32 %s320, 1
        %s2757 = smul.addr %s2756, 8
        %s2758 = scalar_lea.vmem [#allocation16], %s2757
        // Predicated region
        $region105: #{gpt2_block.1} parent=71 // pred_check
          %p2759 = pneg %p330
        $region106: #{gpt2_block.1} parent=71 // pred_check_branch
          %2761 = sbr.rel (%p2759) target = $region108
        $region107: #{gpt2_block.1} parent=71 // pred_region
          %s2763 = ssub.s32 128, 128
          %2764 = vsyncadd %s2755, %s2763
          %s2765 = smul.addr %s34, 128
          %s2766 = scalar_lea.hbm %s13, %s2765
          %s2768 = sshll.u32 %s2758, 4
          %s2769 = int_to_ptr.vmem [resolvable:$true] %s2768
          %2771 = dma.vmem_to_hbm [thread:$0]  %s2769, 128, %s2766, %s2755
        $region108: #{gpt2_block.1} parent=71 // pred_fallthru
          _
      $region72: #{gpt2_block.1} parent=5 // pred_fallthru
        _
      %p2772 = scmp.le.s32.totalorder 2, %s29
      // Predicated region
      $region109: #{gpt2_block.1} parent=5 // pred_check
        %p2773 = pneg %p2772
      $region110: #{gpt2_block.1} parent=5 // pred_check_branch
        %2775 = sbr.rel (%p2773) target = $region112
      $region111: #{gpt2_block.1} parent=5 // pred_region
        %s2776 = ssub.s32 %s29, 2
        // Predicated region
        $region113: #{gpt2_block.1} parent=111 // pred_check
          %p2777 = pneg %p336
        $region114: #{gpt2_block.1} parent=111 // pred_check_branch
          %2779 = sbr.rel (%p2777) target = $region116
        $region115: #{gpt2_block.1} parent=111 // pred_region
          %s2780 = sand.u32 %s321, 1
          %s2781 = scalar_lea.sflag [#allocation4], %s2780
          %s2782 = sand.u32 %s321, 1
          %s2783 = smul.addr %s2782, 8
          %s2784 = scalar_lea.vmem [#allocation16], %s2783
          %2785 = dma.done %s2781, 128
        $region116: #{gpt2_block.1} parent=111 // pred_fallthru
          _
      $region112: #{gpt2_block.1} parent=5 // pred_fallthru
        _
    $region6: #{gpt2_block.1} parent=1 // loop_footer
      %s33 = sadd.s32 1, %s29
    $region7: #{gpt2_block.1} parent=1 // loop_footer_branch
      %28 = sbr.rel target = $region3
    $region8: #{gpt2_block.1} parent=1 // loop_exit
      _
    %2786 = vsyncpa [#allocation3], 1
    %s2787 = scalar_lea.sflag [#allocation3], 1
    %2788 = vsyncpa %s2787, 1
    %2789 = vsyncpa [#allocation6], 1
    %2790 = vsyncpa [#allocation9], 1
    %2791 = vsyncpa [#allocation12], 1
    %2792 = vsyncpa [#allocation15], 1
    %2793 = vsyncpa [#allocation4], 1
    %s2794 = scalar_lea.sflag [#allocation4], 1
    %2795 = vsyncpa %s2794, 1

</llo_original>
